<compile_context>
chip_gen: v5e
topology: v5e:2x2
jax: 0.10.0
libtpu: 0.0.40
codegen_flags: <defaults>
</compile_context>

<pallas_src>
import functools
import math

import jax
import jax.numpy as jnp
import numpy as np
from jax.experimental import pallas as pl
from jax.experimental.pallas import tpu as pltpu


# ----------------------------- in-kernel helpers -----------------------------

def _erf_f32(x):
    # Abramowitz & Stegun 7.1.26 rational approximation (max abs err ~1.5e-7);
    # avoids relying on a Mosaic lowering for lax.erf.
    a1, a2, a3, a4, a5 = (0.254829592, -0.284496736, 1.421413741,
                          -1.453152027, 1.061405429)
    p = 0.3275911
    ax = jnp.abs(x)
    t = 1.0 / (1.0 + p * ax)
    poly = ((((a5 * t + a4) * t + a3) * t + a2) * t + a1) * t
    y = 1.0 - poly * jnp.exp(-ax * ax)
    return jnp.where(x >= 0, y, -y)


def _gelu(x):
    return x * 0.5 * (1.0 + _erf_f32(x * (1.0 / math.sqrt(2.0))))


def _layernorm(x, g, b, eps=1e-5):
    mu = jnp.mean(x, axis=-1, keepdims=True)
    xc = x - mu
    var = jnp.mean(xc * xc, axis=-1, keepdims=True)
    return xc * jax.lax.rsqrt(var + eps) * g + b          # rsqrt -> EUP


# --------------------------------- kernel ------------------------------------

def _transformer_kernel(n_layers, n_heads,
                        emb_ref, neg_ref, wqkv_ref, bqkv_ref,
                        wp_ref, w1_ref, w2_ref, vec_ref, bf1_ref,
                        o_ref):
    f32, bf16 = jnp.float32, jnp.bfloat16
    s_len, d = emb_ref.shape[1], emb_ref.shape[2]          # (1, S, D) block
    w_hd = d // n_heads
    d_ff = w1_ref.shape[1]

    # packed per-feature vectors: rows = [ge, be, bp, g1, b1, bf2, g2, b2]
    vecs = vec_ref[...]
    ge, be = vecs[0:1], vecs[1:2]
    g1, b1 = vecs[3:4], vecs[4:5]
    g2, b2 = vecs[6:7], vecs[7:8]
    # hoist bias broadcasts out of the (unrolled) layer loop
    bp = jnp.broadcast_to(vecs[2:3], (s_len, d))
    bf2 = jnp.broadcast_to(vecs[5:6], (s_len, d))
    bf1 = jnp.broadcast_to(bf1_ref[...], (s_len, d_ff))
    bqkv = jnp.broadcast_to(bqkv_ref[...], (s_len, 3 * d))  # Q part pre-scaled

    neg = neg_ref[0]                                       # (1, S) additive mask
    wqkv = wqkv_ref[...]                                   # (D, 3D) bf16
    wp, w1, w2 = wp_ref[...], w1_ref[...], w2_ref[...]     # bf16 weights

    # Embeddings: tok/pos/seg already gathered & summed in the wrapper.
    h0 = _layernorm(emb_ref[0], ge, be)                    # (S, D) f32

    def layer(_, h):
        # ---- fused QKV: one dense matmul on the un-replicated h ----
        qkv = jnp.dot(h.astype(bf16), wqkv, preferred_element_type=f32) + bqkv
        qkv = qkv.astype(bf16)          # single cast pass for the next MXU ops
        # split heads: (S, D) -> (H, S, Wd)
        q = qkv[:, 0 * d:1 * d].reshape(s_len, n_heads, w_hd).transpose(1, 0, 2)
        k = qkv[:, 1 * d:2 * d].reshape(s_len, n_heads, w_hd).transpose(1, 0, 2)
        v = qkv[:, 2 * d:3 * d].reshape(s_len, n_heads, w_hd).transpose(1, 0, 2)

        # ---- attention (1/sqrt(Wd) already folded into Q) ----
        s = jnp.einsum('hsw,htw->hst', q, k, preferred_element_type=f32)
        s = s - neg                                         # broadcast over H, S_q
        s = s - jnp.max(s, axis=-1, keepdims=True)          # stable softmax (f32)
        p = jnp.exp(s)
        p = p * pl.reciprocal(jnp.sum(p, axis=-1, keepdims=True), approx=True)
        ctx = jnp.einsum('hst,htw->hsw', p.astype(bf16), v,
                         preferred_element_type=f32)         # (H, S, Wd)
        # merge heads with a single relayout: (H, S, Wd) -> (S, D)
        attn = ctx.transpose(1, 0, 2).reshape(s_len, d)

        # ---- h = norm1(attn + proj(attn)) ----
        proj = jnp.dot(attn.astype(bf16), wp, preferred_element_type=f32) + bp
        h = _layernorm(attn + proj, g1, b1)

        # ---- h = norm2(h + pwff(h)) ----
        ff = _gelu(jnp.dot(h.astype(bf16), w1, preferred_element_type=f32) + bf1)
        ff = jnp.dot(ff.astype(bf16), w2, preferred_element_type=f32) + bf2
        return _layernorm(h + ff, g2, b2)

    # TODO(synk): revisit unroll=True if n_layers grows well beyond a handful
    # (large body, no per-layer DMA to hide -> unrolling only bloats I-mem).
    o_ref[0] = jax.lax.fori_loop(0, n_layers, layer, h0, unroll=True)


# -------------------------------- wrapper ------------------------------------

def transformer_pallas(params, x, seg, mask, *, n_layers, n_heads):
    B, S = x.shape
    D = params["wq"].shape[0]
    F = params["w1"].shape[1]
    Wd = D // n_heads
    assert D % n_heads == 0
    f32, bf16 = jnp.float32, jnp.bfloat16
    hp = jax.lax.Precision.HIGHEST

    # ---- plain-JAX glue (gathers + weight packing, no replication) ----
    # Fold tok_embed2 into the gather: (V,E)@(E,D)+b -> (V,D) table.
    tok_tab = jnp.dot(params["tok1"], params["wt2"], precision=hp) + params["bt2"]
    emb = (tok_tab[x] + params["pos"][:S][None, :, :]
           + params["seg_emb"][seg]).astype(f32)            # (B, S, D)

    # additive attention mask, un-replicated: (B, 1, S)
    neg = (10000.0 * (1.0 - mask.astype(f32))).reshape(B, 1, S)

    # fused QKV weights (math layout, x @ W + b); 1/sqrt(Wd) folded into Q.
    inv_sqrt_w = 1.0 / math.sqrt(Wd)
    wqkv = jnp.concatenate([params["wq"] * inv_sqrt_w, params["wk"],
                            params["wv"]], axis=-1).astype(bf16)        # (D, 3D)
    bqkv = jnp.concatenate([params["bq"] * inv_sqrt_w, params["bk"],
                            params["bv"]], axis=-1).reshape(1, 3 * D).astype(f32)

    # pack all (D,)-sized bias / layernorm vectors into one operand
    vec_d = jnp.stack([params["ge"], params["be"], params["bp"], params["g1"],
                       params["b1"], params["bf2"], params["g2"], params["b2"]],
                      axis=0).astype(f32)                                # (8, D)
    bf1 = params["bf1"].reshape(1, F).astype(f32)

    operands = (emb, neg, wqkv, bqkv,
                params["wp"].astype(bf16), params["w1"].astype(bf16),
                params["w2"].astype(bf16), vec_d, bf1)

    def shared(shape):
        zeros = (0,) * len(shape)
        return pl.BlockSpec(shape, lambda b, _z=zeros: _z)

    in_specs = [
        pl.BlockSpec((1, S, D), lambda b: (b, 0, 0)),        # emb   (per batch)
        pl.BlockSpec((1, 1, S), lambda b: (b, 0, 0)),        # mask  (per batch)
        shared(wqkv.shape), shared(bqkv.shape),              # shared weights
        shared((D, D)), shared((D, F)), shared((F, D)),
        shared((8, D)), shared((1, F)),
    ]

    out = pl.pallas_call(
        functools.partial(_transformer_kernel, n_layers, n_heads),
        out_shape=jax.ShapeDtypeStruct((B, S, D), f32),
        grid=(B,),                      # parallel batch axis (feeds both TCs on v7x)
        in_specs=in_specs,
        out_specs=pl.BlockSpec((1, S, D), lambda b: (b, 0, 0)),
        compiler_params=pltpu.CompilerParams(dimension_semantics=("parallel",)),
    )(*operands)
    # TODO(synk): at real model sizes (D multiple of 128, large S) switch to
    # row-tiled BlockSpec pipelining + vmem_limit_bytes; at D=32 the masked
    # final store is noise versus the fixed per-step overhead.
    return out


# ------------------------- pure-JAX reference (check) -------------------------

def transformer_reference(params, x, seg, mask, *, n_layers, n_heads):
    hp = jax.lax.Precision.HIGHEST
    dot = lambda a, b: jnp.dot(a, b, precision=hp)
    erf = jax.scipy.special.erf
    gelu = lambda t: t * 0.5 * (1.0 + erf(t / math.sqrt(2.0)))

    def ln(t, g, b, eps=1e-5):
        mu = jnp.mean(t, axis=-1, keepdims=True)
        var = jnp.mean((t - mu) ** 2, axis=-1, keepdims=True)
        return (t - mu) / jnp.sqrt(var + eps) * g + b

    B, S = x.shape
    D = params["wq"].shape[0]
    Wd = D // n_heads

    e = dot(params["tok1"][x], params["wt2"]) + params["bt2"]
    e = e + params["pos"][jnp.arange(S)][None] + params["seg_emb"][seg]
    h = ln(e, params["ge"], params["be"])
    maskf = mask.astype(jnp.float32)

    for _ in range(n_layers):
        q = dot(h, params["wq"]) + params["bq"]
        k = dot(h, params["wk"]) + params["bk"]
        v = dot(h, params["wv"]) + params["bv"]
        split = lambda t: jnp.transpose(t.reshape(B, S, n_heads, Wd), (0, 2, 1, 3))
        q, k, v = split(q), split(k), split(v)
        scores = jnp.einsum("bhsw,bhtw->bhst", q, k, precision=hp) / math.sqrt(Wd)
        scores = scores - 10000.0 * (1.0 - maskf)[:, None, None, :]
        scores = jax.nn.softmax(scores, axis=-1)
        a = jnp.einsum("bhst,bhtw->bhsw", scores, v, precision=hp)
        a = jnp.transpose(a, (0, 2, 1, 3)).reshape(B, S, D)
        h = ln(a + dot(a, params["wp"]) + params["bp"], params["g1"], params["b1"])
        ff = dot(gelu(dot(h, params["w1"]) + params["bf1"]), params["w2"]) + params["bf2"]
        h = ln(h + ff, params["g2"], params["b2"])
    return h


# ---------------------------------- main --------------------------------------

if __name__ == "__main__":
    # config (cfg): small, consistent with the module's forward
    vocab_size, embedding, hidden, hidden_ff = 32, 16, 32, 64
    max_len, n_segments, n_heads, n_layers = 16, 2, 4, 2
    B, S = 2, 8

    key = jax.random.PRNGKey(0)
    ks = iter(jax.random.split(key, 32))
    nrm = lambda shape, scale: jax.random.normal(next(ks), shape, jnp.float32) * scale

    params = dict(
        tok1=nrm((vocab_size, embedding), 0.5),
        wt2=nrm((embedding, hidden), 0.1), bt2=nrm((hidden,), 0.05),
        pos=nrm((max_len, hidden), 0.2),
        seg_emb=nrm((n_segments, hidden), 0.2),
        ge=1.0 + nrm((hidden,), 0.1), be=nrm((hidden,), 0.05),
        wq=nrm((hidden, hidden), 0.1), bq=nrm((hidden,), 0.05),
        wk=nrm((hidden, hidden), 0.1), bk=nrm((hidden,), 0.05),
        wv=nrm((hidden, hidden), 0.1), bv=nrm((hidden,), 0.05),
        wp=nrm((hidden, hidden), 0.1), bp=nrm((hidden,), 0.05),
        g1=1.0 + nrm((hidden,), 0.1), b1=nrm((hidden,), 0.05),
        w1=nrm((hidden, hidden_ff), 0.1), bf1=nrm((hidden_ff,), 0.05),
        w2=nrm((hidden_ff, hidden), 0.1), bf2=nrm((hidden,), 0.05),
        g2=1.0 + nrm((hidden,), 0.1), b2=nrm((hidden,), 0.05),
    )

    x = jax.random.randint(next(ks), (B, S), 0, vocab_size, dtype=jnp.int32)
    seg = jax.random.randint(next(ks), (B, S), 0, n_segments, dtype=jnp.int32)
    mask = jnp.concatenate(
        [jnp.ones((B, 6), jnp.float32), jnp.zeros((B, S - 6), jnp.float32)], axis=1)

    out = transformer_pallas(params, x, seg, mask, n_layers=n_layers, n_heads=n_heads)
    out = jax.block_until_ready(out)

    ref = transformer_reference(params, x, seg, mask, n_layers=n_layers, n_heads=n_heads)
    # Tolerance widened vs. an f32-only version: the kernel feeds the MXU bf16
    # operands (f32 accumulation) and uses the approx EUP reciprocal in softmax.
    np.testing.assert_allclose(np.asarray(out), np.asarray(ref), atol=3e-2, rtol=3e-2)
    print("KERNEL_OK")
</pallas_src>

<mosaic_0001>
module attributes {stable_mosaic.version = 11 : i64} {
  func.func @_transformer_kernel(%arg0: i32, %arg1: memref<1x8x32xf32, #tpu.memory_space<vmem>>, %arg2: memref<1x1x8xf32, #tpu.memory_space<vmem>>, %arg3: memref<32x96xbf16, #tpu.memory_space<vmem>>, %arg4: memref<1x96xf32, #tpu.memory_space<vmem>>, %arg5: memref<32x32xbf16, #tpu.memory_space<vmem>>, %arg6: memref<32x64xbf16, #tpu.memory_space<vmem>>, %arg7: memref<64x32xbf16, #tpu.memory_space<vmem>>, %arg8: memref<8x32xf32, #tpu.memory_space<vmem>>, %arg9: memref<1x64xf32, #tpu.memory_space<vmem>>, %arg10: memref<1x8x32xf32, #tpu.memory_space<vmem>>) attributes {dimension_semantics = [#tpu.dimension_semantics<parallel>], iteration_bounds = array<i64: 2>, scalar_prefetch = 0 : i64, scratch_operands = 0 : i64, tpu.core_type = #tpu.core_type<tc>, window_params = [{transform_indices = @transform_0, window_bounds = array<i64: 1, 8, 32>}, {transform_indices = @transform_1, window_bounds = array<i64: 1, 1, 8>}, {pipeline_mode = #tpu.pipeline_mode<synchronous>, transform_indices = @transform_2, window_bounds = array<i64: 32, 96>}, {pipeline_mode = #tpu.pipeline_mode<synchronous>, transform_indices = @transform_3, window_bounds = array<i64: 1, 96>}, {pipeline_mode = #tpu.pipeline_mode<synchronous>, transform_indices = @transform_4, window_bounds = array<i64: 32, 32>}, {pipeline_mode = #tpu.pipeline_mode<synchronous>, transform_indices = @transform_5, window_bounds = array<i64: 32, 64>}, {pipeline_mode = #tpu.pipeline_mode<synchronous>, transform_indices = @transform_6, window_bounds = array<i64: 64, 32>}, {pipeline_mode = #tpu.pipeline_mode<synchronous>, transform_indices = @transform_7, window_bounds = array<i64: 8, 32>}, {pipeline_mode = #tpu.pipeline_mode<synchronous>, transform_indices = @transform_8, window_bounds = array<i64: 1, 64>}, {transform_indices = @transform_9, window_bounds = array<i64: 1, 8, 32>}]} {
    %c0 = arith.constant 0 : index
    %c0_0 = arith.constant 0 : index
    %0 = vector.load %arg8[%c0, %c0_0] : memref<8x32xf32, #tpu.memory_space<vmem>>, vector<8x32xf32>
    %1 = vector.extract_strided_slice %0 {offsets = [0, 0], sizes = [1, 32], strides = [1, 1]} : vector<8x32xf32> to vector<1x32xf32>
    %2 = vector.extract_strided_slice %0 {offsets = [1, 0], sizes = [1, 32], strides = [1, 1]} : vector<8x32xf32> to vector<1x32xf32>
    %3 = vector.extract_strided_slice %0 {offsets = [3, 0], sizes = [1, 32], strides = [1, 1]} : vector<8x32xf32> to vector<1x32xf32>
    %4 = vector.extract_strided_slice %0 {offsets = [4, 0], sizes = [1, 32], strides = [1, 1]} : vector<8x32xf32> to vector<1x32xf32>
    %5 = vector.extract_strided_slice %0 {offsets = [6, 0], sizes = [1, 32], strides = [1, 1]} : vector<8x32xf32> to vector<1x32xf32>
    %6 = vector.extract_strided_slice %0 {offsets = [7, 0], sizes = [1, 32], strides = [1, 1]} : vector<8x32xf32> to vector<1x32xf32>
    %7 = vector.extract_strided_slice %0 {offsets = [2, 0], sizes = [1, 32], strides = [1, 1]} : vector<8x32xf32> to vector<1x32xf32>
    %8 = vector.shape_cast %7 : vector<1x32xf32> to vector<1x32xf32>
    %9 = vector.broadcast %8 : vector<1x32xf32> to vector<8x32xf32>
    %10 = vector.extract_strided_slice %0 {offsets = [5, 0], sizes = [1, 32], strides = [1, 1]} : vector<8x32xf32> to vector<1x32xf32>
    %11 = vector.shape_cast %10 : vector<1x32xf32> to vector<1x32xf32>
    %12 = vector.broadcast %11 : vector<1x32xf32> to vector<8x32xf32>
    %c0_1 = arith.constant 0 : index
    %c0_2 = arith.constant 0 : index
    %13 = vector.load %arg9[%c0_1, %c0_2] : memref<1x64xf32, #tpu.memory_space<vmem>>, vector<1x64xf32>
    %14 = vector.shape_cast %13 : vector<1x64xf32> to vector<1x64xf32>
    %15 = vector.broadcast %14 : vector<1x64xf32> to vector<8x64xf32>
    %c0_3 = arith.constant 0 : index
    %c0_4 = arith.constant 0 : index
    %16 = vector.load %arg4[%c0_3, %c0_4] : memref<1x96xf32, #tpu.memory_space<vmem>>, vector<1x96xf32>
    %17 = vector.shape_cast %16 : vector<1x96xf32> to vector<1x96xf32>
    %18 = vector.broadcast %17 : vector<1x96xf32> to vector<8x96xf32>
    %c0_5 = arith.constant 0 : index
    %c0_6 = arith.constant 0 : index
    %c0_7 = arith.constant 0 : index
    %19 = vector.load %arg2[%c0_5, %c0_6, %c0_7] : memref<1x1x8xf32, #tpu.memory_space<vmem>>, vector<1x1x8xf32>
    %20 = vector.shape_cast %19 : vector<1x1x8xf32> to vector<1x8xf32>
    %c0_8 = arith.constant 0 : index
    %c0_9 = arith.constant 0 : index
    %21 = vector.load %arg3[%c0_8, %c0_9] : memref<32x96xbf16, #tpu.memory_space<vmem>>, vector<32x96xbf16>
    %c0_10 = arith.constant 0 : index
    %c0_11 = arith.constant 0 : index
    %22 = vector.load %arg5[%c0_10, %c0_11] : memref<32x32xbf16, #tpu.memory_space<vmem>>, vector<32x32xbf16>
    %c0_12 = arith.constant 0 : index
    %c0_13 = arith.constant 0 : index
    %23 = vector.load %arg6[%c0_12, %c0_13] : memref<32x64xbf16, #tpu.memory_space<vmem>>, vector<32x64xbf16>
    %c0_14 = arith.constant 0 : index
    %c0_15 = arith.constant 0 : index
    %24 = vector.load %arg7[%c0_14, %c0_15] : memref<64x32xbf16, #tpu.memory_space<vmem>>, vector<64x32xbf16>
    %c0_16 = arith.constant 0 : index
    %c0_17 = arith.constant 0 : index
    %c0_18 = arith.constant 0 : index
    %25 = vector.load %arg1[%c0_16, %c0_17, %c0_18] : memref<1x8x32xf32, #tpu.memory_space<vmem>>, vector<1x8x32xf32>
    %26 = vector.shape_cast %25 : vector<1x8x32xf32> to vector<8x32xf32>
    %cst = arith.constant dense<0.000000e+00> : vector<8xf32>
    %27 = vector.multi_reduction <add>, %26, %cst [1] : vector<8x32xf32> to vector<8xf32>
    %28 = vector.shape_cast %27 : vector<8xf32> to vector<8x1xf32>
    %cst_19 = arith.constant 3.200000e+01 : f32
    %29 = vector.broadcast %cst_19 : f32 to vector<8x1xf32>
    %30 = arith.divf %28, %29 : vector<8x1xf32>
    %31 = vector.broadcast %30 : vector<8x1xf32> to vector<8x32xf32>
    %32 = arith.subf %26, %31 : vector<8x32xf32>
    %33 = arith.mulf %32, %32 : vector<8x32xf32>
    %cst_20 = arith.constant dense<0.000000e+00> : vector<8xf32>
    %34 = vector.multi_reduction <add>, %33, %cst_20 [1] : vector<8x32xf32> to vector<8xf32>
    %35 = vector.shape_cast %34 : vector<8xf32> to vector<8x1xf32>
    %cst_21 = arith.constant 3.200000e+01 : f32
    %36 = vector.broadcast %cst_21 : f32 to vector<8x1xf32>
    %37 = arith.divf %35, %36 : vector<8x1xf32>
    %cst_22 = arith.constant 9.99999974E-6 : f32
    %38 = vector.broadcast %cst_22 : f32 to vector<8x1xf32>
    %39 = arith.addf %37, %38 : vector<8x1xf32>
    %40 = math.rsqrt %39 : vector<8x1xf32>
    %41 = vector.broadcast %40 : vector<8x1xf32> to vector<8x32xf32>
    %42 = arith.mulf %32, %41 : vector<8x32xf32>
    %43 = vector.broadcast %1 : vector<1x32xf32> to vector<8x32xf32>
    %44 = arith.mulf %42, %43 : vector<8x32xf32>
    %45 = vector.broadcast %2 : vector<1x32xf32> to vector<8x32xf32>
    %46 = arith.addf %44, %45 : vector<8x32xf32>
    %c0_i32 = arith.constant 0 : i32
    %47 = arith.truncf %46 : vector<8x32xf32> to vector<8x32xbf16>
    %cst_23 = arith.constant dense<0.000000e+00> : vector<8x96xf32>
    %48 = tpu.matmul %47, %21, %cst_23 {dimension_numbers = #tpu.dot_dimension_numbers<[1], [0], [0], [1], [0, 0, 1, 1], [], []>} : vector<8x32xbf16>, vector<32x96xbf16>, vector<8x96xf32> -> vector<8x96xf32>
    %49 = arith.addf %48, %18 : vector<8x96xf32>
    %50 = arith.truncf %49 : vector<8x96xf32> to vector<8x96xbf16>
    %51 = vector.extract_strided_slice %50 {offsets = [0, 0], sizes = [8, 32], strides = [1, 1]} : vector<8x96xbf16> to vector<8x32xbf16>
    %52 = vector.shape_cast %51 : vector<8x32xbf16> to vector<8x4x8xbf16>
    %53 = tpu.transpose %52, [1, 0, 2] : vector<8x4x8xbf16> -> vector<4x8x8xbf16>
    %54 = vector.extract_strided_slice %50 {offsets = [0, 32], sizes = [8, 32], strides = [1, 1]} : vector<8x96xbf16> to vector<8x32xbf16>
    %55 = vector.shape_cast %54 : vector<8x32xbf16> to vector<8x4x8xbf16>
    %56 = tpu.transpose %55, [1, 0, 2] : vector<8x4x8xbf16> -> vector<4x8x8xbf16>
    %57 = vector.extract_strided_slice %50 {offsets = [0, 64], sizes = [8, 32], strides = [1, 1]} : vector<8x96xbf16> to vector<8x32xbf16>
    %58 = vector.shape_cast %57 : vector<8x32xbf16> to vector<8x4x8xbf16>
    %59 = tpu.transpose %58, [1, 0, 2] : vector<8x4x8xbf16> -> vector<4x8x8xbf16>
    "tpu.trace_start"() <{level = 10 : i32, message = "hsw,htw->hst"}> : () -> ()
    %cst_24 = arith.constant dense<0.000000e+00> : vector<4x8x8xf32>
    %60 = tpu.matmul %53, %56, %cst_24 {dimension_numbers = #tpu.dot_dimension_numbers<[2], [2], [1], [1], [0, 0, 0, 1, 1, 1], [0], [0]>} : vector<4x8x8xbf16>, vector<4x8x8xbf16>, vector<4x8x8xf32> -> vector<4x8x8xf32>
    "tpu.trace_stop"() : () -> ()
    %61 = vector.shape_cast %20 : vector<1x8xf32> to vector<1x1x8xf32>
    %62 = vector.broadcast %61 : vector<1x1x8xf32> to vector<4x8x8xf32>
    %63 = arith.subf %60, %62 : vector<4x8x8xf32>
    %cst_25 = arith.constant dense<0xFF800000> : vector<4x8xf32>
    %64 = vector.multi_reduction <maximumf>, %63, %cst_25 [2] : vector<4x8x8xf32> to vector<4x8xf32>
    %65 = vector.shape_cast %64 : vector<4x8xf32> to vector<4x8x1xf32>
    %66 = vector.broadcast %65 : vector<4x8x1xf32> to vector<4x8x8xf32>
    %67 = arith.subf %63, %66 : vector<4x8x8xf32>
    %68 = math.exp %67 : vector<4x8x8xf32>
    %cst_26 = arith.constant dense<0.000000e+00> : vector<4x8xf32>
    %69 = vector.multi_reduction <add>, %68, %cst_26 [2] : vector<4x8x8xf32> to vector<4x8xf32>
    %70 = vector.shape_cast %69 : vector<4x8xf32> to vector<4x8x1xf32>
    %71 = tpu.reciprocal %70 {approx = true} : vector<4x8x1xf32> -> vector<4x8x1xf32>
    %72 = vector.broadcast %71 : vector<4x8x1xf32> to vector<4x8x8xf32>
    %73 = arith.mulf %68, %72 : vector<4x8x8xf32>
    %74 = arith.truncf %73 : vector<4x8x8xf32> to vector<4x8x8xbf16>
    "tpu.trace_start"() <{level = 10 : i32, message = "hst,htw->hsw"}> : () -> ()
    %cst_27 = arith.constant dense<0.000000e+00> : vector<4x8x8xf32>
    %75 = tpu.matmul %74, %59, %cst_27 {dimension_numbers = #tpu.dot_dimension_numbers<[2], [1], [1], [2], [0, 0, 0, 1, 1, 2], [0], [0]>} : vector<4x8x8xbf16>, vector<4x8x8xbf16>, vector<4x8x8xf32> -> vector<4x8x8xf32>
    "tpu.trace_stop"() : () -> ()
    %76 = tpu.transpose %75, [1, 0, 2] : vector<4x8x8xf32> -> vector<8x4x8xf32>
    %77 = vector.shape_cast %76 : vector<8x4x8xf32> to vector<8x32xf32>
    %78 = arith.truncf %77 : vector<8x32xf32> to vector<8x32xbf16>
    %cst_28 = arith.constant dense<0.000000e+00> : vector<8x32xf32>
    %79 = tpu.matmul %78, %22, %cst_28 {dimension_numbers = #tpu.dot_dimension_numbers<[1], [0], [0], [1], [0, 0, 1, 1], [], []>} : vector<8x32xbf16>, vector<32x32xbf16>, vector<8x32xf32> -> vector<8x32xf32>
    %80 = arith.addf %79, %9 : vector<8x32xf32>
    %81 = arith.addf %77, %80 : vector<8x32xf32>
    %cst_29 = arith.constant dense<0.000000e+00> : vector<8xf32>
    %82 = vector.multi_reduction <add>, %81, %cst_29 [1] : vector<8x32xf32> to vector<8xf32>
    %83 = vector.shape_cast %82 : vector<8xf32> to vector<8x1xf32>
    %cst_30 = arith.constant 3.200000e+01 : f32
    %84 = vector.broadcast %cst_30 : f32 to vector<8x1xf32>
    %85 = arith.divf %83, %84 : vector<8x1xf32>
    %86 = vector.broadcast %85 : vector<8x1xf32> to vector<8x32xf32>
    %87 = arith.subf %81, %86 : vector<8x32xf32>
    %88 = arith.mulf %87, %87 : vector<8x32xf32>
    %cst_31 = arith.constant dense<0.000000e+00> : vector<8xf32>
    %89 = vector.multi_reduction <add>, %88, %cst_31 [1] : vector<8x32xf32> to vector<8xf32>
    %90 = vector.shape_cast %89 : vector<8xf32> to vector<8x1xf32>
    %cst_32 = arith.constant 3.200000e+01 : f32
    %91 = vector.broadcast %cst_32 : f32 to vector<8x1xf32>
    %92 = arith.divf %90, %91 : vector<8x1xf32>
    %cst_33 = arith.constant 9.99999974E-6 : f32
    %93 = vector.broadcast %cst_33 : f32 to vector<8x1xf32>
    %94 = arith.addf %92, %93 : vector<8x1xf32>
    %95 = math.rsqrt %94 : vector<8x1xf32>
    %96 = vector.broadcast %95 : vector<8x1xf32> to vector<8x32xf32>
    %97 = arith.mulf %87, %96 : vector<8x32xf32>
    %98 = vector.broadcast %3 : vector<1x32xf32> to vector<8x32xf32>
    %99 = arith.mulf %97, %98 : vector<8x32xf32>
    %100 = vector.broadcast %4 : vector<1x32xf32> to vector<8x32xf32>
    %101 = arith.addf %99, %100 : vector<8x32xf32>
    %102 = arith.truncf %101 : vector<8x32xf32> to vector<8x32xbf16>
    %cst_34 = arith.constant dense<0.000000e+00> : vector<8x64xf32>
    %103 = tpu.matmul %102, %23, %cst_34 {dimension_numbers = #tpu.dot_dimension_numbers<[1], [0], [0], [1], [0, 0, 1, 1], [], []>} : vector<8x32xbf16>, vector<32x64xbf16>, vector<8x64xf32> -> vector<8x64xf32>
    %104 = arith.addf %103, %15 : vector<8x64xf32>
    %cst_35 = arith.constant 5.000000e-01 : f32
    %105 = vector.broadcast %cst_35 : f32 to vector<8x64xf32>
    %106 = arith.mulf %104, %105 : vector<8x64xf32>
    %cst_36 = arith.constant 0.707106769 : f32
    %107 = vector.broadcast %cst_36 : f32 to vector<8x64xf32>
    %108 = arith.mulf %104, %107 : vector<8x64xf32>
    %109 = math.absf %108 : vector<8x64xf32>
    %cst_37 = arith.constant 0.327591091 : f32
    %110 = vector.broadcast %cst_37 : f32 to vector<8x64xf32>
    %111 = arith.mulf %110, %109 : vector<8x64xf32>
    %cst_38 = arith.constant 1.000000e+00 : f32
    %112 = vector.broadcast %cst_38 : f32 to vector<8x64xf32>
    %113 = arith.addf %112, %111 : vector<8x64xf32>
    %cst_39 = arith.constant 1.000000e+00 : f32
    %114 = vector.broadcast %cst_39 : f32 to vector<8x64xf32>
    %115 = arith.divf %114, %113 : vector<8x64xf32>
    %cst_40 = arith.constant 1.06140542 : f32
    %116 = vector.broadcast %cst_40 : f32 to vector<8x64xf32>
    %117 = arith.mulf %116, %115 : vector<8x64xf32>
    %cst_41 = arith.constant -1.45315206 : f32
    %118 = vector.broadcast %cst_41 : f32 to vector<8x64xf32>
    %119 = arith.addf %117, %118 : vector<8x64xf32>
    %120 = arith.mulf %119, %115 : vector<8x64xf32>
    %cst_42 = arith.constant 1.42141378 : f32
    %121 = vector.broadcast %cst_42 : f32 to vector<8x64xf32>
    %122 = arith.addf %120, %121 : vector<8x64xf32>
    %123 = arith.mulf %122, %115 : vector<8x64xf32>
    %cst_43 = arith.constant -0.284496725 : f32
    %124 = vector.broadcast %cst_43 : f32 to vector<8x64xf32>
    %125 = arith.addf %123, %124 : vector<8x64xf32>
    %126 = arith.mulf %125, %115 : vector<8x64xf32>
    %cst_44 = arith.constant 0.254829586 : f32
    %127 = vector.broadcast %cst_44 : f32 to vector<8x64xf32>
    %128 = arith.addf %126, %127 : vector<8x64xf32>
    %129 = arith.mulf %128, %115 : vector<8x64xf32>
    %cst_45 = arith.constant 0.000000e+00 : f32
    %130 = vector.broadcast %cst_45 : f32 to vector<8x64xf32>
    %131 = arith.subf %130, %109 : vector<8x64xf32>
    %132 = arith.mulf %131, %109 : vector<8x64xf32>
    %133 = math.exp %132 : vector<8x64xf32>
    %134 = arith.mulf %129, %133 : vector<8x64xf32>
    %cst_46 = arith.constant 1.000000e+00 : f32
    %135 = vector.broadcast %cst_46 : f32 to vector<8x64xf32>
    %136 = arith.subf %135, %134 : vector<8x64xf32>
    %cst_47 = arith.constant 0.000000e+00 : f32
    %137 = vector.broadcast %cst_47 : f32 to vector<8x64xf32>
    %138 = arith.cmpf oge, %108, %137 : vector<8x64xf32>
    %cst_48 = arith.constant 0.000000e+00 : f32
    %139 = vector.broadcast %cst_48 : f32 to vector<8x64xf32>
    %140 = arith.subf %139, %136 : vector<8x64xf32>
    %141 = arith.select %138, %136, %140 : vector<8x64xi1>, vector<8x64xf32>
    %cst_49 = arith.constant 1.000000e+00 : f32
    %142 = vector.broadcast %cst_49 : f32 to vector<8x64xf32>
    %143 = arith.addf %142, %141 : vector<8x64xf32>
    %144 = arith.mulf %106, %143 : vector<8x64xf32>
    %145 = arith.truncf %144 : vector<8x64xf32> to vector<8x64xbf16>
    %cst_50 = arith.constant dense<0.000000e+00> : vector<8x32xf32>
    %146 = tpu.matmul %145, %24, %cst_50 {dimension_numbers = #tpu.dot_dimension_numbers<[1], [0], [0], [1], [0, 0, 1, 1], [], []>} : vector<8x64xbf16>, vector<64x32xbf16>, vector<8x32xf32> -> vector<8x32xf32>
    %147 = arith.addf %146, %12 : vector<8x32xf32>
    %148 = arith.addf %101, %147 : vector<8x32xf32>
    %cst_51 = arith.constant dense<0.000000e+00> : vector<8xf32>
    %149 = vector.multi_reduction <add>, %148, %cst_51 [1] : vector<8x32xf32> to vector<8xf32>
    %150 = vector.shape_cast %149 : vector<8xf32> to vector<8x1xf32>
    %cst_52 = arith.constant 3.200000e+01 : f32
    %151 = vector.broadcast %cst_52 : f32 to vector<8x1xf32>
    %152 = arith.divf %150, %151 : vector<8x1xf32>
    %153 = vector.broadcast %152 : vector<8x1xf32> to vector<8x32xf32>
    %154 = arith.subf %148, %153 : vector<8x32xf32>
    %155 = arith.mulf %154, %154 : vector<8x32xf32>
    %cst_53 = arith.constant dense<0.000000e+00> : vector<8xf32>
    %156 = vector.multi_reduction <add>, %155, %cst_53 [1] : vector<8x32xf32> to vector<8xf32>
    %157 = vector.shape_cast %156 : vector<8xf32> to vector<8x1xf32>
    %cst_54 = arith.constant 3.200000e+01 : f32
    %158 = vector.broadcast %cst_54 : f32 to vector<8x1xf32>
    %159 = arith.divf %157, %158 : vector<8x1xf32>
    %cst_55 = arith.constant 9.99999974E-6 : f32
    %160 = vector.broadcast %cst_55 : f32 to vector<8x1xf32>
    %161 = arith.addf %159, %160 : vector<8x1xf32>
    %162 = math.rsqrt %161 : vector<8x1xf32>
    %163 = vector.broadcast %162 : vector<8x1xf32> to vector<8x32xf32>
    %164 = arith.mulf %154, %163 : vector<8x32xf32>
    %165 = vector.broadcast %5 : vector<1x32xf32> to vector<8x32xf32>
    %166 = arith.mulf %164, %165 : vector<8x32xf32>
    %167 = vector.broadcast %6 : vector<1x32xf32> to vector<8x32xf32>
    %168 = arith.addf %166, %167 : vector<8x32xf32>
    %c1_i32 = arith.constant 1 : i32
    %169 = arith.truncf %168 : vector<8x32xf32> to vector<8x32xbf16>
    %cst_56 = arith.constant dense<0.000000e+00> : vector<8x96xf32>
    %170 = tpu.matmul %169, %21, %cst_56 {dimension_numbers = #tpu.dot_dimension_numbers<[1], [0], [0], [1], [0, 0, 1, 1], [], []>} : vector<8x32xbf16>, vector<32x96xbf16>, vector<8x96xf32> -> vector<8x96xf32>
    %171 = arith.addf %170, %18 : vector<8x96xf32>
    %172 = arith.truncf %171 : vector<8x96xf32> to vector<8x96xbf16>
    %173 = vector.extract_strided_slice %172 {offsets = [0, 0], sizes = [8, 32], strides = [1, 1]} : vector<8x96xbf16> to vector<8x32xbf16>
    %174 = vector.shape_cast %173 : vector<8x32xbf16> to vector<8x4x8xbf16>
    %175 = tpu.transpose %174, [1, 0, 2] : vector<8x4x8xbf16> -> vector<4x8x8xbf16>
    %176 = vector.extract_strided_slice %172 {offsets = [0, 32], sizes = [8, 32], strides = [1, 1]} : vector<8x96xbf16> to vector<8x32xbf16>
    %177 = vector.shape_cast %176 : vector<8x32xbf16> to vector<8x4x8xbf16>
    %178 = tpu.transpose %177, [1, 0, 2] : vector<8x4x8xbf16> -> vector<4x8x8xbf16>
    %179 = vector.extract_strided_slice %172 {offsets = [0, 64], sizes = [8, 32], strides = [1, 1]} : vector<8x96xbf16> to vector<8x32xbf16>
    %180 = vector.shape_cast %179 : vector<8x32xbf16> to vector<8x4x8xbf16>
    %181 = tpu.transpose %180, [1, 0, 2] : vector<8x4x8xbf16> -> vector<4x8x8xbf16>
    "tpu.trace_start"() <{level = 10 : i32, message = "hsw,htw->hst"}> : () -> ()
    %cst_57 = arith.constant dense<0.000000e+00> : vector<4x8x8xf32>
    %182 = tpu.matmul %175, %178, %cst_57 {dimension_numbers = #tpu.dot_dimension_numbers<[2], [2], [1], [1], [0, 0, 0, 1, 1, 1], [0], [0]>} : vector<4x8x8xbf16>, vector<4x8x8xbf16>, vector<4x8x8xf32> -> vector<4x8x8xf32>
    "tpu.trace_stop"() : () -> ()
    %183 = vector.shape_cast %20 : vector<1x8xf32> to vector<1x1x8xf32>
    %184 = vector.broadcast %183 : vector<1x1x8xf32> to vector<4x8x8xf32>
    %185 = arith.subf %182, %184 : vector<4x8x8xf32>
    %cst_58 = arith.constant dense<0xFF800000> : vector<4x8xf32>
    %186 = vector.multi_reduction <maximumf>, %185, %cst_58 [2] : vector<4x8x8xf32> to vector<4x8xf32>
    %187 = vector.shape_cast %186 : vector<4x8xf32> to vector<4x8x1xf32>
    %188 = vector.broadcast %187 : vector<4x8x1xf32> to vector<4x8x8xf32>
    %189 = arith.subf %185, %188 : vector<4x8x8xf32>
    %190 = math.exp %189 : vector<4x8x8xf32>
    %cst_59 = arith.constant dense<0.000000e+00> : vector<4x8xf32>
    %191 = vector.multi_reduction <add>, %190, %cst_59 [2] : vector<4x8x8xf32> to vector<4x8xf32>
    %192 = vector.shape_cast %191 : vector<4x8xf32> to vector<4x8x1xf32>
    %193 = tpu.reciprocal %192 {approx = true} : vector<4x8x1xf32> -> vector<4x8x1xf32>
    %194 = vector.broadcast %193 : vector<4x8x1xf32> to vector<4x8x8xf32>
    %195 = arith.mulf %190, %194 : vector<4x8x8xf32>
    %196 = arith.truncf %195 : vector<4x8x8xf32> to vector<4x8x8xbf16>
    "tpu.trace_start"() <{level = 10 : i32, message = "hst,htw->hsw"}> : () -> ()
    %cst_60 = arith.constant dense<0.000000e+00> : vector<4x8x8xf32>
    %197 = tpu.matmul %196, %181, %cst_60 {dimension_numbers = #tpu.dot_dimension_numbers<[2], [1], [1], [2], [0, 0, 0, 1, 1, 2], [0], [0]>} : vector<4x8x8xbf16>, vector<4x8x8xbf16>, vector<4x8x8xf32> -> vector<4x8x8xf32>
    "tpu.trace_stop"() : () -> ()
    %198 = tpu.transpose %197, [1, 0, 2] : vector<4x8x8xf32> -> vector<8x4x8xf32>
    %199 = vector.shape_cast %198 : vector<8x4x8xf32> to vector<8x32xf32>
    %200 = arith.truncf %199 : vector<8x32xf32> to vector<8x32xbf16>
    %cst_61 = arith.constant dense<0.000000e+00> : vector<8x32xf32>
    %201 = tpu.matmul %200, %22, %cst_61 {dimension_numbers = #tpu.dot_dimension_numbers<[1], [0], [0], [1], [0, 0, 1, 1], [], []>} : vector<8x32xbf16>, vector<32x32xbf16>, vector<8x32xf32> -> vector<8x32xf32>
    %202 = arith.addf %201, %9 : vector<8x32xf32>
    %203 = arith.addf %199, %202 : vector<8x32xf32>
    %cst_62 = arith.constant dense<0.000000e+00> : vector<8xf32>
    %204 = vector.multi_reduction <add>, %203, %cst_62 [1] : vector<8x32xf32> to vector<8xf32>
    %205 = vector.shape_cast %204 : vector<8xf32> to vector<8x1xf32>
    %cst_63 = arith.constant 3.200000e+01 : f32
    %206 = vector.broadcast %cst_63 : f32 to vector<8x1xf32>
    %207 = arith.divf %205, %206 : vector<8x1xf32>
    %208 = vector.broadcast %207 : vector<8x1xf32> to vector<8x32xf32>
    %209 = arith.subf %203, %208 : vector<8x32xf32>
    %210 = arith.mulf %209, %209 : vector<8x32xf32>
    %cst_64 = arith.constant dense<0.000000e+00> : vector<8xf32>
    %211 = vector.multi_reduction <add>, %210, %cst_64 [1] : vector<8x32xf32> to vector<8xf32>
    %212 = vector.shape_cast %211 : vector<8xf32> to vector<8x1xf32>
    %cst_65 = arith.constant 3.200000e+01 : f32
    %213 = vector.broadcast %cst_65 : f32 to vector<8x1xf32>
    %214 = arith.divf %212, %213 : vector<8x1xf32>
    %cst_66 = arith.constant 9.99999974E-6 : f32
    %215 = vector.broadcast %cst_66 : f32 to vector<8x1xf32>
    %216 = arith.addf %214, %215 : vector<8x1xf32>
    %217 = math.rsqrt %216 : vector<8x1xf32>
    %218 = vector.broadcast %217 : vector<8x1xf32> to vector<8x32xf32>
    %219 = arith.mulf %209, %218 : vector<8x32xf32>
    %220 = vector.broadcast %3 : vector<1x32xf32> to vector<8x32xf32>
    %221 = arith.mulf %219, %220 : vector<8x32xf32>
    %222 = vector.broadcast %4 : vector<1x32xf32> to vector<8x32xf32>
    %223 = arith.addf %221, %222 : vector<8x32xf32>
    %224 = arith.truncf %223 : vector<8x32xf32> to vector<8x32xbf16>
    %cst_67 = arith.constant dense<0.000000e+00> : vector<8x64xf32>
    %225 = tpu.matmul %224, %23, %cst_67 {dimension_numbers = #tpu.dot_dimension_numbers<[1], [0], [0], [1], [0, 0, 1, 1], [], []>} : vector<8x32xbf16>, vector<32x64xbf16>, vector<8x64xf32> -> vector<8x64xf32>
    %226 = arith.addf %225, %15 : vector<8x64xf32>
    %cst_68 = arith.constant 5.000000e-01 : f32
    %227 = vector.broadcast %cst_68 : f32 to vector<8x64xf32>
    %228 = arith.mulf %226, %227 : vector<8x64xf32>
    %cst_69 = arith.constant 0.707106769 : f32
    %229 = vector.broadcast %cst_69 : f32 to vector<8x64xf32>
    %230 = arith.mulf %226, %229 : vector<8x64xf32>
    %231 = math.absf %230 : vector<8x64xf32>
    %cst_70 = arith.constant 0.327591091 : f32
    %232 = vector.broadcast %cst_70 : f32 to vector<8x64xf32>
    %233 = arith.mulf %232, %231 : vector<8x64xf32>
    %cst_71 = arith.constant 1.000000e+00 : f32
    %234 = vector.broadcast %cst_71 : f32 to vector<8x64xf32>
    %235 = arith.addf %234, %233 : vector<8x64xf32>
    %cst_72 = arith.constant 1.000000e+00 : f32
    %236 = vector.broadcast %cst_72 : f32 to vector<8x64xf32>
    %237 = arith.divf %236, %235 : vector<8x64xf32>
    %cst_73 = arith.constant 1.06140542 : f32
    %238 = vector.broadcast %cst_73 : f32 to vector<8x64xf32>
    %239 = arith.mulf %238, %237 : vector<8x64xf32>
    %cst_74 = arith.constant -1.45315206 : f32
    %240 = vector.broadcast %cst_74 : f32 to vector<8x64xf32>
    %241 = arith.addf %239, %240 : vector<8x64xf32>
    %242 = arith.mulf %241, %237 : vector<8x64xf32>
    %cst_75 = arith.constant 1.42141378 : f32
    %243 = vector.broadcast %cst_75 : f32 to vector<8x64xf32>
    %244 = arith.addf %242, %243 : vector<8x64xf32>
    %245 = arith.mulf %244, %237 : vector<8x64xf32>
    %cst_76 = arith.constant -0.284496725 : f32
    %246 = vector.broadcast %cst_76 : f32 to vector<8x64xf32>
    %247 = arith.addf %245, %246 : vector<8x64xf32>
    %248 = arith.mulf %247, %237 : vector<8x64xf32>
    %cst_77 = arith.constant 0.254829586 : f32
    %249 = vector.broadcast %cst_77 : f32 to vector<8x64xf32>
    %250 = arith.addf %248, %249 : vector<8x64xf32>
    %251 = arith.mulf %250, %237 : vector<8x64xf32>
    %cst_78 = arith.constant 0.000000e+00 : f32
    %252 = vector.broadcast %cst_78 : f32 to vector<8x64xf32>
    %253 = arith.subf %252, %231 : vector<8x64xf32>
    %254 = arith.mulf %253, %231 : vector<8x64xf32>
    %255 = math.exp %254 : vector<8x64xf32>
    %256 = arith.mulf %251, %255 : vector<8x64xf32>
    %cst_79 = arith.constant 1.000000e+00 : f32
    %257 = vector.broadcast %cst_79 : f32 to vector<8x64xf32>
    %258 = arith.subf %257, %256 : vector<8x64xf32>
    %cst_80 = arith.constant 0.000000e+00 : f32
    %259 = vector.broadcast %cst_80 : f32 to vector<8x64xf32>
    %260 = arith.cmpf oge, %230, %259 : vector<8x64xf32>
    %cst_81 = arith.constant 0.000000e+00 : f32
    %261 = vector.broadcast %cst_81 : f32 to vector<8x64xf32>
    %262 = arith.subf %261, %258 : vector<8x64xf32>
    %263 = arith.select %260, %258, %262 : vector<8x64xi1>, vector<8x64xf32>
    %cst_82 = arith.constant 1.000000e+00 : f32
    %264 = vector.broadcast %cst_82 : f32 to vector<8x64xf32>
    %265 = arith.addf %264, %263 : vector<8x64xf32>
    %266 = arith.mulf %228, %265 : vector<8x64xf32>
    %267 = arith.truncf %266 : vector<8x64xf32> to vector<8x64xbf16>
    %cst_83 = arith.constant dense<0.000000e+00> : vector<8x32xf32>
    %268 = tpu.matmul %267, %24, %cst_83 {dimension_numbers = #tpu.dot_dimension_numbers<[1], [0], [0], [1], [0, 0, 1, 1], [], []>} : vector<8x64xbf16>, vector<64x32xbf16>, vector<8x32xf32> -> vector<8x32xf32>
    %269 = arith.addf %268, %12 : vector<8x32xf32>
    %270 = arith.addf %223, %269 : vector<8x32xf32>
    %cst_84 = arith.constant dense<0.000000e+00> : vector<8xf32>
    %271 = vector.multi_reduction <add>, %270, %cst_84 [1] : vector<8x32xf32> to vector<8xf32>
    %272 = vector.shape_cast %271 : vector<8xf32> to vector<8x1xf32>
    %cst_85 = arith.constant 3.200000e+01 : f32
    %273 = vector.broadcast %cst_85 : f32 to vector<8x1xf32>
    %274 = arith.divf %272, %273 : vector<8x1xf32>
    %275 = vector.broadcast %274 : vector<8x1xf32> to vector<8x32xf32>
    %276 = arith.subf %270, %275 : vector<8x32xf32>
    %277 = arith.mulf %276, %276 : vector<8x32xf32>
    %cst_86 = arith.constant dense<0.000000e+00> : vector<8xf32>
    %278 = vector.multi_reduction <add>, %277, %cst_86 [1] : vector<8x32xf32> to vector<8xf32>
    %279 = vector.shape_cast %278 : vector<8xf32> to vector<8x1xf32>
    %cst_87 = arith.constant 3.200000e+01 : f32
    %280 = vector.broadcast %cst_87 : f32 to vector<8x1xf32>
    %281 = arith.divf %279, %280 : vector<8x1xf32>
    %cst_88 = arith.constant 9.99999974E-6 : f32
    %282 = vector.broadcast %cst_88 : f32 to vector<8x1xf32>
    %283 = arith.addf %281, %282 : vector<8x1xf32>
    %284 = math.rsqrt %283 : vector<8x1xf32>
    %285 = vector.broadcast %284 : vector<8x1xf32> to vector<8x32xf32>
    %286 = arith.mulf %276, %285 : vector<8x32xf32>
    %287 = vector.broadcast %5 : vector<1x32xf32> to vector<8x32xf32>
    %288 = arith.mulf %286, %287 : vector<8x32xf32>
    %289 = vector.broadcast %6 : vector<1x32xf32> to vector<8x32xf32>
    %290 = arith.addf %288, %289 : vector<8x32xf32>
    %c0_89 = arith.constant 0 : index
    %c0_90 = arith.constant 0 : index
    %c0_91 = arith.constant 0 : index
    %291 = vector.load %arg10[%c0_89, %c0_90, %c0_91] : memref<1x8x32xf32, #tpu.memory_space<vmem>>, vector<1x8x32xf32>
    %292 = vector.shape_cast %291 : vector<1x8x32xf32> to vector<8x32xf32>
    %293 = vector.shape_cast %290 : vector<8x32xf32> to vector<1x8x32xf32>
    tpu.vector_store %arg10[%c0_89, %c0_90, %c0_91], %293 {strides = array<i32>} : memref<1x8x32xf32, #tpu.memory_space<vmem>>, vector<1x8x32xf32>,
    return
  }
  func.func @transform_0(%arg0: i32) -> (i32, i32, i32) {
    %c0_i32 = arith.constant 0 : i32
    %c0_i32_0 = arith.constant 0 : i32
    %c0_i32_1 = arith.constant 0 : i32
    return %arg0, %c0_i32, %c0_i32_0 : i32, i32, i32
  }
  func.func @transform_1(%arg0: i32) -> (i32, i32, i32) {
    %c0_i32 = arith.constant 0 : i32
    %c0_i32_0 = arith.constant 0 : i32
    %c0_i32_1 = arith.constant 0 : i32
    return %arg0, %c0_i32, %c0_i32_0 : i32, i32, i32
  }
  func.func @transform_2(%arg0: i32) -> (i32, i32) {
    %c0_i32 = arith.constant 0 : i32
    %c0_i32_0 = arith.constant 0 : i32
    %c0_i32_1 = arith.constant 0 : i32
    return %c0_i32, %c0_i32_0 : i32, i32
  }
  func.func @transform_3(%arg0: i32) -> (i32, i32) {
    %c0_i32 = arith.constant 0 : i32
    %c0_i32_0 = arith.constant 0 : i32
    %c0_i32_1 = arith.constant 0 : i32
    return %c0_i32, %c0_i32_0 : i32, i32
  }
  func.func @transform_4(%arg0: i32) -> (i32, i32) {
    %c0_i32 = arith.constant 0 : i32
    %c0_i32_0 = arith.constant 0 : i32
    %c0_i32_1 = arith.constant 0 : i32
    return %c0_i32, %c0_i32_0 : i32, i32
  }
  func.func @transform_5(%arg0: i32) -> (i32, i32) {
    %c0_i32 = arith.constant 0 : i32
    %c0_i32_0 = arith.constant 0 : i32
    %c0_i32_1 = arith.constant 0 : i32
    return %c0_i32, %c0_i32_0 : i32, i32
  }
  func.func @transform_6(%arg0: i32) -> (i32, i32) {
    %c0_i32 = arith.constant 0 : i32
    %c0_i32_0 = arith.constant 0 : i32
    %c0_i32_1 = arith.constant 0 : i32
    return %c0_i32, %c0_i32_0 : i32, i32
  }
  func.func @transform_7(%arg0: i32) -> (i32, i32) {
    %c0_i32 = arith.constant 0 : i32
    %c0_i32_0 = arith.constant 0 : i32
    %c0_i32_1 = arith.constant 0 : i32
    return %c0_i32, %c0_i32_0 : i32, i32
  }
  func.func @transform_8(%arg0: i32) -> (i32, i32) {
    %c0_i32 = arith.constant 0 : i32
    %c0_i32_0 = arith.constant 0 : i32
    %c0_i32_1 = arith.constant 0 : i32
    return %c0_i32, %c0_i32_0 : i32, i32
  }
  func.func @transform_9(%arg0: i32) -> (i32, i32, i32) {
    %c0_i32 = arith.constant 0 : i32
    %c0_i32_0 = arith.constant 0 : i32
    %c0_i32_1 = arith.constant 0 : i32
    return %arg0, %c0_i32, %c0_i32_0 : i32, i32, i32
  }
}

</mosaic_0001>

<llo_original>
// kernel: tpu_custom_call.1
$region0: #{tpu_custom_call.1}
  #allocation0 [shape = 'u32[]', space=smem, size = 0x4, offset = 0x4, fixed_abs, tag = 'smem constant byte address 0x4 - core index']
  #allocation1 [shape = 'u32[72,128]{1,0:T(1,128)}', space=vmem, size = 0x9000, scoped, tag = 'internal scratch']
  %s0 = inlined_call_operand.vmem [shape: f32[2,8,32], index: 0, kind: input, shape index: {}]
  %s1 = inlined_call_operand.hbm [shape: f32[2,1,8], index: 1, kind: input, shape index: {}]
  %s2 = inlined_call_operand.vmem [shape: bf16[32,96], index: 2, kind: input, shape index: {}]
  %s3 = inlined_call_operand.vmem [shape: f32[1,96], index: 3, kind: input, shape index: {}]
  %s4 = inlined_call_operand.vmem [shape: bf16[32,32], index: 4, kind: input, shape index: {}]
  %s5 = inlined_call_operand.hbm [shape: bf16[32,64], index: 5, kind: input, shape index: {}]
  %s6 = inlined_call_operand.vmem [shape: bf16[64,32], index: 6, kind: input, shape index: {}]
  %s7 = inlined_call_operand.hbm [shape: f32[8,32], index: 7, kind: input, shape index: {}]
  %s8 = inlined_call_operand.vmem [shape: f32[1,64], index: 8, kind: input, shape index: {}]
  %s9 = inlined_call_operand.hbm [shape: f32[2,8,32], index: 9, kind: output, shape index: {}]
  %s10 = sld [smem:[#allocation0]]
  $region81: #{tpu_custom_call.1} parent=0
    _
  %s12 = ssub.s32 1, %s10
  %s13 = scalar_select 0, %s12, %s10
  $region1: #{tpu_custom_call.1} parent=0
    #allocation2 [shape = 'u8[1024]{0}', space=vmem, size = 0x400, scoped, tag = 'input window, operand 1']
    #allocation3 [shape = 's32[2]{0}', space=sflag, size = 0x8, scoped, tag = 'scoped memory for tpu_custom_call.1']
    #allocation4 [shape = 's32[2]{0}', space=sflag, size = 0x8, scoped, tag = 'scoped memory for tpu_custom_call.1']
    #allocation5 [shape = 'u8[8192]{0}', space=vmem, size = 0x2000, scoped, tag = 'input window, operand 5, single buffered']
    #allocation6 [shape = 's32[1]{0}', space=sflag, size = 0x4, scoped, tag = 'scoped memory for tpu_custom_call.1']
    #allocation7 [shape = 'u8[4096]{0}', space=vmem, size = 0x1000, scoped, tag = 'input window, operand 7, single buffered']
    #allocation8 [shape = 'u8[8192]{0}', space=vmem, size = 0x2000, scoped, tag = 'output window, operand 0']
    %14 = vsyncpa [#allocation3], 0
    %s15 = scalar_lea.sflag [#allocation3], 1
    %16 = vsyncpa %s15, 0
    %17 = vsyncpa [#allocation6], 0
    %18 = vsyncpa [#allocation4], 0
    %s19 = scalar_lea.sflag [#allocation4], 1
    %20 = vsyncpa %s19, 0
    loop: start=0, step=1, limit=4
    $region2: #{tpu_custom_call.1} parent=1 // loop_pre_header
      _
    $region3: #{tpu_custom_call.1} parent=1 // loop_header
      %s22 = sphi 0, %s26
      %p23 = scmp.ge.s32.totalorder %s22, 4
      %s32 = sphi 0, %s34
      %s35 = sphi 0, %s32
      %s36 = sphi 0, %s35
      %s52 = sphi 0, %s36
      %s58 = sphi 0, %s60
      %s61 = sphi 0, %s58
      %s62 = sphi 0, %s61
      %s78 = sphi 0, %s62
      %s82 = sphi 0, %s82
      %s84 = sphi 0, %s82
      %s85 = sphi 0, %s84
      %s99 = sphi 0, %s85
      %s103 = sphi 0, %s103
      %s105 = sphi 0, %s103
      %s106 = sphi 0, %s105
      %s120 = sphi 0, %s106
      %s124 = sphi 0, %s124
      %s126 = sphi 0, %s124
      %s127 = sphi 0, %s126
      %s141 = sphi 0, %s127
      %s145 = sphi 0, %s145
      %s147 = sphi 0, %s145
      %s148 = sphi 0, %s147
      %s162 = sphi 0, %s148
      %s166 = sphi 0, %s166
      %s168 = sphi 0, %s166
      %s169 = sphi 0, %s168
      %s183 = sphi 0, %s169
      %s187 = sphi 0, %s187
      %s189 = sphi 0, %s187
      %s190 = sphi 0, %s189
      %s204 = sphi 0, %s190
      %s208 = sphi 0, %s208
      %s210 = sphi 0, %s208
      %s211 = sphi 0, %s210
      %s225 = sphi 0, %s211
      %s231 = sphi 0, %s233
      %s234 = sphi 0, %s231
      %s235 = sphi 0, %s234
      %s251 = sphi 0, %s235
    $region4: #{tpu_custom_call.1} parent=1 // loop_header_branch
      %25 = sbr.rel (%p23) target = $region8
    $region5: #{tpu_custom_call.1} parent=1 // loop_body
      %s27 = ssub.s32 %s22, 1
      %s28 = ssub.s32 %s22, 2
      %s29 = sadd.s32 %s22, 1
      %s30 = ssub.s32 %s22, %s29
      %p31 = scmp.eq.s32.totalorder %s30, 0
      %s33 = sadd.s32 %s32, 1
      %s34 = scalar_select %p31, %s32, %s33
      %p37 = pneg %p31
      %p38 = scmp.eq.s32.totalorder %s22, 1
      %p39 = por %p37, %p38
      %p40 = scmp.ne.s32.totalorder %s32, %s35
      %p41 = scmp.eq.s32.totalorder %s22, 0
      %p42 = por %p40, %p41
      %p43 = scmp.ne.s32.totalorder %s32, %s35
      %p44 = scmp.eq.s32.totalorder %s27, 1
      %p45 = por %p43, %p44
      %p46 = scmp.ne.s32.totalorder %s35, %s36
      %p47 = scmp.eq.s32.totalorder %s27, 0
      %p48 = por %p46, %p47
      %p49 = scmp.ne.s32.totalorder %s35, %s36
      %p50 = scmp.eq.s32.totalorder %s28, 1
      %p51 = por %p49, %p50
      %p53 = scmp.ne.s32.totalorder %s36, %s52
      %p54 = scmp.eq.s32.totalorder %s28, 0
      %p55 = por %p53, %p54
      %s56 = ssub.s32 %s22, %s29
      %p57 = scmp.eq.s32.totalorder %s56, 0
      %s59 = sadd.s32 %s58, 1
      %s60 = scalar_select %p57, %s58, %s59
      %p63 = pneg %p57
      %p64 = scmp.eq.s32.totalorder %s22, 1
      %p65 = por %p63, %p64
      %p66 = scmp.ne.s32.totalorder %s58, %s61
      %p67 = scmp.eq.s32.totalorder %s22, 0
      %p68 = por %p66, %p67
      %p69 = scmp.ne.s32.totalorder %s58, %s61
      %p70 = scmp.eq.s32.totalorder %s27, 1
      %p71 = por %p69, %p70
      %p72 = scmp.ne.s32.totalorder %s61, %s62
      %p73 = scmp.eq.s32.totalorder %s27, 0
      %p74 = por %p72, %p73
      %p75 = scmp.ne.s32.totalorder %s61, %s62
      %p76 = scmp.eq.s32.totalorder %s28, 1
      %p77 = por %p75, %p76
      %p79 = scmp.ne.s32.totalorder %s62, %s78
      %p80 = scmp.eq.s32.totalorder %s28, 0
      %p81 = por %p79, %p80
      %s83 = sadd.s32 %s82, 1
      %p86 = scmp.eq.s32.totalorder %s22, 1
      %p87 = scmp.ne.s32.totalorder %s82, %s84
      %p88 = scmp.eq.s32.totalorder %s22, 0
      %p89 = por %p87, %p88
      %p90 = scmp.ne.s32.totalorder %s82, %s84
      %p91 = scmp.eq.s32.totalorder %s27, 1
      %p92 = por %p90, %p91
      %p93 = scmp.ne.s32.totalorder %s84, %s85
      %p94 = scmp.eq.s32.totalorder %s27, 0
      %p95 = por %p93, %p94
      %p96 = scmp.ne.s32.totalorder %s84, %s85
      %p97 = scmp.eq.s32.totalorder %s28, 1
      %p98 = por %p96, %p97
      %p100 = scmp.ne.s32.totalorder %s85, %s99
      %p101 = scmp.eq.s32.totalorder %s28, 0
      %p102 = por %p100, %p101
      %s104 = sadd.s32 %s103, 1
      %p107 = scmp.eq.s32.totalorder %s22, 1
      %p108 = scmp.ne.s32.totalorder %s103, %s105
      %p109 = scmp.eq.s32.totalorder %s22, 0
      %p110 = por %p108, %p109
      %p111 = scmp.ne.s32.totalorder %s103, %s105
      %p112 = scmp.eq.s32.totalorder %s27, 1
      %p113 = por %p111, %p112
      %p114 = scmp.ne.s32.totalorder %s105, %s106
      %p115 = scmp.eq.s32.totalorder %s27, 0
      %p116 = por %p114, %p115
      %p117 = scmp.ne.s32.totalorder %s105, %s106
      %p118 = scmp.eq.s32.totalorder %s28, 1
      %p119 = por %p117, %p118
      %p121 = scmp.ne.s32.totalorder %s106, %s120
      %p122 = scmp.eq.s32.totalorder %s28, 0
      %p123 = por %p121, %p122
      %s125 = sadd.s32 %s124, 1
      %p128 = scmp.eq.s32.totalorder %s22, 1
      %p129 = scmp.ne.s32.totalorder %s124, %s126
      %p130 = scmp.eq.s32.totalorder %s22, 0
      %p131 = por %p129, %p130
      %p132 = scmp.ne.s32.totalorder %s124, %s126
      %p133 = scmp.eq.s32.totalorder %s27, 1
      %p134 = por %p132, %p133
      %p135 = scmp.ne.s32.totalorder %s126, %s127
      %p136 = scmp.eq.s32.totalorder %s27, 0
      %p137 = por %p135, %p136
      %p138 = scmp.ne.s32.totalorder %s126, %s127
      %p139 = scmp.eq.s32.totalorder %s28, 1
      %p140 = por %p138, %p139
      %p142 = scmp.ne.s32.totalorder %s127, %s141
      %p143 = scmp.eq.s32.totalorder %s28, 0
      %p144 = por %p142, %p143
      %s146 = sadd.s32 %s145, 1
      %p149 = scmp.eq.s32.totalorder %s22, 1
      %p150 = scmp.ne.s32.totalorder %s145, %s147
      %p151 = scmp.eq.s32.totalorder %s22, 0
      %p152 = por %p150, %p151
      %p153 = scmp.ne.s32.totalorder %s145, %s147
      %p154 = scmp.eq.s32.totalorder %s27, 1
      %p155 = por %p153, %p154
      %p156 = scmp.ne.s32.totalorder %s147, %s148
      %p157 = scmp.eq.s32.totalorder %s27, 0
      %p158 = por %p156, %p157
      %p159 = scmp.ne.s32.totalorder %s147, %s148
      %p160 = scmp.eq.s32.totalorder %s28, 1
      %p161 = por %p159, %p160
      %p163 = scmp.ne.s32.totalorder %s148, %s162
      %p164 = scmp.eq.s32.totalorder %s28, 0
      %p165 = por %p163, %p164
      %s167 = sadd.s32 %s166, 1
      %p170 = scmp.eq.s32.totalorder %s22, 1
      %p171 = scmp.ne.s32.totalorder %s166, %s168
      %p172 = scmp.eq.s32.totalorder %s22, 0
      %p173 = por %p171, %p172
      %p174 = scmp.ne.s32.totalorder %s166, %s168
      %p175 = scmp.eq.s32.totalorder %s27, 1
      %p176 = por %p174, %p175
      %p177 = scmp.ne.s32.totalorder %s168, %s169
      %p178 = scmp.eq.s32.totalorder %s27, 0
      %p179 = por %p177, %p178
      %p180 = scmp.ne.s32.totalorder %s168, %s169
      %p181 = scmp.eq.s32.totalorder %s28, 1
      %p182 = por %p180, %p181
      %p184 = scmp.ne.s32.totalorder %s169, %s183
      %p185 = scmp.eq.s32.totalorder %s28, 0
      %p186 = por %p184, %p185
      %s188 = sadd.s32 %s187, 1
      %p191 = scmp.eq.s32.totalorder %s22, 1
      %p192 = scmp.ne.s32.totalorder %s187, %s189
      %p193 = scmp.eq.s32.totalorder %s22, 0
      %p194 = por %p192, %p193
      %p195 = scmp.ne.s32.totalorder %s187, %s189
      %p196 = scmp.eq.s32.totalorder %s27, 1
      %p197 = por %p195, %p196
      %p198 = scmp.ne.s32.totalorder %s189, %s190
      %p199 = scmp.eq.s32.totalorder %s27, 0
      %p200 = por %p198, %p199
      %p201 = scmp.ne.s32.totalorder %s189, %s190
      %p202 = scmp.eq.s32.totalorder %s28, 1
      %p203 = por %p201, %p202
      %p205 = scmp.ne.s32.totalorder %s190, %s204
      %p206 = scmp.eq.s32.totalorder %s28, 0
      %p207 = por %p205, %p206
      %s209 = sadd.s32 %s208, 1
      %p212 = scmp.eq.s32.totalorder %s22, 1
      %p213 = scmp.ne.s32.totalorder %s208, %s210
      %p214 = scmp.eq.s32.totalorder %s22, 0
      %p215 = por %p213, %p214
      %p216 = scmp.ne.s32.totalorder %s208, %s210
      %p217 = scmp.eq.s32.totalorder %s27, 1
      %p218 = por %p216, %p217
      %p219 = scmp.ne.s32.totalorder %s210, %s211
      %p220 = scmp.eq.s32.totalorder %s27, 0
      %p221 = por %p219, %p220
      %p222 = scmp.ne.s32.totalorder %s210, %s211
      %p223 = scmp.eq.s32.totalorder %s28, 1
      %p224 = por %p222, %p223
      %p226 = scmp.ne.s32.totalorder %s211, %s225
      %p227 = scmp.eq.s32.totalorder %s28, 0
      %p228 = por %p226, %p227
      %s229 = ssub.s32 %s22, %s29
      %p230 = scmp.eq.s32.totalorder %s229, 0
      %s232 = sadd.s32 %s231, 1
      %s233 = scalar_select %p230, %s231, %s232
      %p236 = pneg %p230
      %p237 = scmp.eq.s32.totalorder %s22, 1
      %p238 = por %p236, %p237
      %p239 = scmp.ne.s32.totalorder %s231, %s234
      %p240 = scmp.eq.s32.totalorder %s22, 0
      %p241 = por %p239, %p240
      %p242 = scmp.ne.s32.totalorder %s231, %s234
      %p243 = scmp.eq.s32.totalorder %s27, 1
      %p244 = por %p242, %p243
      %p245 = scmp.ne.s32.totalorder %s234, %s235
      %p246 = scmp.eq.s32.totalorder %s27, 0
      %p247 = por %p245, %p246
      %p248 = scmp.ne.s32.totalorder %s234, %s235
      %p249 = scmp.eq.s32.totalorder %s28, 1
      %p250 = por %p248, %p249
      %p252 = scmp.ne.s32.totalorder %s235, %s251
      %p253 = scmp.eq.s32.totalorder %s28, 0
      %p254 = por %p252, %p253
      %p255 = scmp.le.s32.totalorder 1, %s22
      %p256 = scmp.lt.s32.totalorder %s22, 3
      %p257 = pnand %p255, %p256
      %p258 = pneg %p257
      // Predicated region
      $region9: #{tpu_custom_call.1} parent=5 // pred_check
        _
      $region10: #{tpu_custom_call.1} parent=5 // pred_check_branch
        %260 = sbr.rel (%p257) target = $region12
      $region11: #{tpu_custom_call.1} parent=5 // pred_region
        %s261 = ssub.s32 %s22, 1
        // Predicated region
        $region13: #{tpu_custom_call.1} parent=11 // pred_check
          %p262 = pneg %p95
        $region14: #{tpu_custom_call.1} parent=11 // pred_check_branch
          %264 = sbr.rel (%p262) target = $region16
        $region15: #{tpu_custom_call.1} parent=11 // pred_region
          _
        $region16: #{tpu_custom_call.1} parent=11 // pred_fallthru
          _
        // Predicated region
        $region17: #{tpu_custom_call.1} parent=11 // pred_check
          %p265 = pneg %p116
        $region18: #{tpu_custom_call.1} parent=11 // pred_check_branch
          %267 = sbr.rel (%p265) target = $region20
        $region19: #{tpu_custom_call.1} parent=11 // pred_region
          _
        $region20: #{tpu_custom_call.1} parent=11 // pred_fallthru
          _
        // Predicated region
        $region21: #{tpu_custom_call.1} parent=11 // pred_check
          %p268 = pneg %p137
        $region22: #{tpu_custom_call.1} parent=11 // pred_check_branch
          %270 = sbr.rel (%p268) target = $region24
        $region23: #{tpu_custom_call.1} parent=11 // pred_region
          _
        $region24: #{tpu_custom_call.1} parent=11 // pred_fallthru
          _
        // Predicated region
        $region25: #{tpu_custom_call.1} parent=11 // pred_check
          %p271 = pneg %p158
        $region26: #{tpu_custom_call.1} parent=11 // pred_check_branch
          %273 = sbr.rel (%p271) target = $region28
        $region27: #{tpu_custom_call.1} parent=11 // pred_region
          %275 = vsyncadd [#allocation6], 0
          %s276 = sshll.u32 %s5, 4
          %s277 = int_to_ptr.hbm [resolvable:$true] %s276
          %s278 = sshll.u32 [#allocation5], 4
          %s279 = int_to_ptr.vmem [resolvable:$true] %s278
          %284 = dma.hbm_to_vmem [thread:$0]  %s277, 256, %s279, [#allocation6], 64, 64, 4
        $region28: #{tpu_custom_call.1} parent=11 // pred_fallthru
          _
        // Predicated region
        $region29: #{tpu_custom_call.1} parent=11 // pred_check
          %p285 = pneg %p179
        $region30: #{tpu_custom_call.1} parent=11 // pred_check_branch
          %287 = sbr.rel (%p285) target = $region32
        $region31: #{tpu_custom_call.1} parent=11 // pred_region
          _
        $region32: #{tpu_custom_call.1} parent=11 // pred_fallthru
          _
        // Predicated region
        $region33: #{tpu_custom_call.1} parent=11 // pred_check
          %p288 = pneg %p200
        $region34: #{tpu_custom_call.1} parent=11 // pred_check_branch
          %290 = sbr.rel (%p288) target = $region36
        $region35: #{tpu_custom_call.1} parent=11 // pred_region
          %292 = vsyncadd [#allocation6], 0
          %s294 = sshll.u32 %s7, 4
          %s295 = int_to_ptr.hbm [resolvable:$true] %s294
          %s296 = sshll.u32 [#allocation7], 4
          %s297 = int_to_ptr.vmem [resolvable:$true] %s296
          %299 = dma.hbm_to_vmem [thread:$0]  %s295, 128, %s297, [#allocation6]
        $region36: #{tpu_custom_call.1} parent=11 // pred_fallthru
          _
        // Predicated region
        $region37: #{tpu_custom_call.1} parent=11 // pred_check
          %p300 = pneg %p221
        $region38: #{tpu_custom_call.1} parent=11 // pred_check_branch
          %302 = sbr.rel (%p300) target = $region40
        $region39: #{tpu_custom_call.1} parent=11 // pred_region
          _
        $region40: #{tpu_custom_call.1} parent=11 // pred_fallthru
          _
      $region12: #{tpu_custom_call.1} parent=5 // pred_fallthru
        _
      %p303 = scmp.lt.s32.totalorder %s22, 2
      // Predicated region
      $region41: #{tpu_custom_call.1} parent=5 // pred_check
        %p304 = pneg %p303
      $region42: #{tpu_custom_call.1} parent=5 // pred_check_branch
        %306 = sbr.rel (%p304) target = $region44
      $region43: #{tpu_custom_call.1} parent=5 // pred_region
        // Predicated region
        $region45: #{tpu_custom_call.1} parent=43 // pred_check
          %p307 = pneg %p42
        $region46: #{tpu_custom_call.1} parent=43 // pred_check_branch
          %309 = sbr.rel (%p307) target = $region48
        $region47: #{tpu_custom_call.1} parent=43 // pred_region
          %p310 = scmp.lt.s32.totalorder %s22, 1
          %s311 = scalar_select %p310, %s22, 1
          %s312 = smul.addr %s311, 8
          %s313 = scalar_lea.vmem %s0, %s312
        $region48: #{tpu_custom_call.1} parent=43 // pred_fallthru
          _
        // Predicated region
        $region49: #{tpu_custom_call.1} parent=43 // pred_check
          %p314 = pneg %p68
        $region50: #{tpu_custom_call.1} parent=43 // pred_check_branch
          %316 = sbr.rel (%p314) target = $region52
        $region51: #{tpu_custom_call.1} parent=43 // pred_region
          %s317 = sand.u32 %s58, 1
          %s318 = scalar_lea.sflag [#allocation3], %s317
          %s319 = sand.u32 %s58, 1
          %s320 = scalar_lea.vmem [#allocation2], %s319
          %322 = vsyncadd %s318, 0
          %s323 = scalar_lea.hbm %s1, %s22
          %s325 = sshll.u32 %s323, 4
          %s326 = int_to_ptr.hbm [resolvable:$true] %s325
          %s327 = sshll.u32 %s320, 4
          %s328 = int_to_ptr.vmem [resolvable:$true] %s327
          %330 = dma.hbm_to_vmem [thread:$0]  %s326, 16, %s328, %s318
        $region52: #{tpu_custom_call.1} parent=43 // pred_fallthru
          _
      $region44: #{tpu_custom_call.1} parent=5 // pred_fallthru
        _
      %p331 = scmp.le.s32.totalorder 1, %s22
      %p332 = scmp.lt.s32.totalorder %s22, 3
      %p333 = pnand %p331, %p332
      %p334 = pneg %p333
      // Predicated region
      $region53: #{tpu_custom_call.1} parent=5 // pred_check
        _
      $region54: #{tpu_custom_call.1} parent=5 // pred_check_branch
        %336 = sbr.rel (%p333) target = $region56
      $region55: #{tpu_custom_call.1} parent=5 // pred_region
        %s337 = ssub.s32 %s22, 1
        %s338 = sand.u32 %s61, 1
        %s339 = scalar_lea.sflag [#allocation3], %s338
        %s340 = sand.u32 %s61, 1
        %s341 = scalar_lea.vmem [#allocation2], %s340
        // Predicated region
        $region57: #{tpu_custom_call.1} parent=55 // pred_check
          %p342 = pneg %p74
        $region58: #{tpu_custom_call.1} parent=55 // pred_check_branch
          %344 = sbr.rel (%p342) target = $region60
        $region59: #{tpu_custom_call.1} parent=55 // pred_region
          %346 = dma.done %s339, 16
        $region60: #{tpu_custom_call.1} parent=55 // pred_fallthru
          _
        // Predicated region
        $region61: #{tpu_custom_call.1} parent=55 // pred_check
          %p347 = pneg %p158
        $region62: #{tpu_custom_call.1} parent=55 // pred_check_branch
          %349 = sbr.rel (%p347) target = $region64
        $region63: #{tpu_custom_call.1} parent=55 // pred_region
          %351 = dma.done [#allocation6], 256
        $region64: #{tpu_custom_call.1} parent=55 // pred_fallthru
          _
        // Predicated region
        $region65: #{tpu_custom_call.1} parent=55 // pred_check
          %p352 = pneg %p200
        $region66: #{tpu_custom_call.1} parent=55 // pred_check_branch
          %354 = sbr.rel (%p352) target = $region68
        $region67: #{tpu_custom_call.1} parent=55 // pred_region
          %356 = dma.done [#allocation6], 128
        $region68: #{tpu_custom_call.1} parent=55 // pred_fallthru
          _
        %p357 = scmp.lt.s32.totalorder %s27, 1
        %s358 = scalar_select %p357, %s27, 1
        %s359 = smul.addr %s358, 8
        %s360 = scalar_lea.vmem %s0, %s359
        %p361 = pneg %p48
        %p362 = pneg %p45
        %s363 = sand.u32 %s61, 1
        %s364 = scalar_lea.sflag [#allocation3], %s363
        %s365 = sand.u32 %s61, 1
        %s366 = scalar_lea.vmem [#allocation2], %s365
        %p367 = pneg %p74
        %p368 = pneg %p71
        %p369 = pneg %p95
        %p370 = pneg %p92
        %p371 = pneg %p116
        %p372 = pneg %p113
        %p373 = pneg %p137
        %p374 = pneg %p134
        %p375 = pneg %p158
        %p376 = pneg %p155
        %p377 = pneg %p179
        %p378 = pneg %p176
        %p379 = pneg %p200
        %p380 = pneg %p197
        %p381 = pneg %p221
        %p382 = pneg %p218
        %p383 = pneg %p247
        %p384 = pneg %p244
        %s385 = sand.u32 %s234, 1
        %s386 = scalar_lea.sflag [#allocation4], %s385
        %s387 = sand.u32 %s234, 1
        %s388 = smul.addr %s387, 8
        %s389 = scalar_lea.vmem [#allocation8], %s388
        %p390 = scmp.lt.s32.totalorder %s27, 1
        %s391 = scalar_select %p390, %s27, 1
        %s392 = smul.addr %s391, 8
        %s393 = scalar_lea.vmem %s0, %s392
        %v395 = vld [vmem:[#allocation7] sm:$0xff]
        %v396 = vperm.slane %v395, 2
        %v397 = vperm.slane %v395, 5
        %v398 = vld [vmem:[%s8] sm:$0x1]
        %v400 = vperm.slane %v398, 0
        %v402 = vld [vmem:[%s3] sm:$0x1]
        %v404 = vperm.slane %v402, 0
        %v406 = vld [vmem:[%s341] sm:$0x1]
        %v407 = vld [vmem:[%s2] sm:$0xf]
        %v408 = vld [vmem:[%s2 + $0x4] sm:$0xf]
        %v409 = vld [vmem:[%s2 + $0x8] sm:$0xf]
        %v410 = vld [vmem:[%s2 + $0xc] sm:$0xf]
        %v411 = vld [vmem:[%s4] sm:$0xf]
        %v412 = vld [vmem:[%s4 + $0x4] sm:$0xf]
        %v413 = vld [vmem:[%s4 + $0x8] sm:$0xf]
        %v414 = vld [vmem:[%s4 + $0xc] sm:$0xf]
        %v415 = vld [vmem:[#allocation5] sm:$0xf]
        %v416 = vld [vmem:[#allocation5 + $0x4] sm:$0xf]
        %v417 = vld [vmem:[#allocation5 + $0x8] sm:$0xf]
        %v418 = vld [vmem:[#allocation5 + $0xc] sm:$0xf]
        %v419 = vld [vmem:[%s6] sm:$0xf]
        %v420 = vld [vmem:[%s6 + $0x4] sm:$0xf]
        %v421 = vld [vmem:[%s6 + $0x8] sm:$0xf]
        %v422 = vld [vmem:[%s6 + $0xc] sm:$0xf]
        %v423 = vld [vmem:[%s6 + $0x10] sm:$0xf]
        %v424 = vld [vmem:[%s6 + $0x14] sm:$0xf]
        %v425 = vld [vmem:[%s6 + $0x18] sm:$0xf]
        %v426 = vld [vmem:[%s6 + $0x1c] sm:$0xf]
        %v427 = vld [vmem:[%s393] sm:$0xff]
        %vm428 = vcmask 261120
        %v429 = vsel %vm428, %v427, 0.0
        %430 = vadd.xlane.f32.xlu0 %v429
        %v431 = vpop.xlane.xlu0 %430
        %v432 = vrcp.pop 32.0
        %v433 = vmul.f32 32.0, %v432
        %v434 = vsub.f32 1.0, %v433
        %v435 = vmul.f32 %v432, %v434
        %v436 = vadd.f32 %v432, %v435
        %vm437 = vweird.f32 %v432
        %v438 = vsel %vm437, %v432, %v436
        %v439 = vmul.f32 %v431, %v438
        %v440 = vsub.f32 %v427, %v439
        %v441 = vmul.f32 %v440, %v440
        %v442 = vsel %vm428, %v441, 0.0
        %443 = vadd.xlane.f32.xlu0 %v442
        %v444 = vpop.xlane.xlu0 %443
        %v445 = vmul.f32 %v444, %v438
        %v446 = vadd.f32 %v445, 1e-05
        %v447 = vrsqrt.pop %v446
        %v448 = vmul.f32 %v447, %v446
        %v449 = vmul.f32 %v448, %v447
        %v450 = vmul.f32 0.5, %v449
        %v451 = vsub.f32 1.5, %v450
        %v452 = vmul.f32 %v447, %v451
        %vm453 = vweird.f32 %v446
        %vm454 = vweird.f32 %v447
        %vm455 = vmor %vm453, %vm454
        %v456 = vsel %vm455, %v447, %v452
        %v457 = vmul.f32 %v440, %v456
        %v458 = vperm.slane %v395, 0
        %v459 = vmul.f32 %v457, %v458
        %v460 = vperm.slane %v395, 1
        %v461 = vadd.f32 %v459, %v460
        %v462 = vpack.c.bf16 %v461, %v461
        %v467 = vunpack.c.l.b16 %v407
        %v468 = vunpack.c.l.b16 %v408
        %v469 = vunpack.c.l.b16 %v409
        %v470 = vunpack.c.l.b16 %v410
        %v471 = vpack.c.b16 %v468, %v467
        %v472 = vpack.c.b16 %v470, %v469
        %v476 = vsel %vm428, %v462, 0
        %478 = vmatpush.bf16.msra.mxu0 0
        %479 = vmatpush.bf16.msra.mxu0 0
        %480 = vmatpush.bf16.msra.mxu0 0
        %481 = vmatpush.bf16.msra.mxu0 0
        %482 = vmatpush.bf16.msra.mxu0 0
        %483 = vmatpush.bf16.msra.mxu0 0
        %484 = vmatpush.bf16.msra.mxu0 %v472
        %485 = vmatpush.bf16.msra.mxu0 %v471
        %486 = vmatmul.bf16.gmra.mxu0 %v476
        %v487 = vpop.f32.mrf.mxu0
        %v488 = vadd.f32 %v404, %v487
        %v489 = vpop.f32.mrf.mxu0
        %490 = vdwg.mxu0
        %v491 = vpack.c.bf16 %v488, %v488
        %493 = vrot.lane.b32.xlu0 %v491, 120
        %v494 = vpop.permute.xlu0 %493
        %495 = vrot.lane.b32.xlu0 %v491, 112
        %v496 = vpop.permute.xlu0 %495
        %497 = vrot.lane.b32.xlu0 %v491, 104
        %v498 = vpop.permute.xlu0 %497
        %v501 = vpack.i.b16 %v494, %v491
        %v502 = vshrl.u32 %v491, 16
        %v503 = vshrl.u32 %v494, 16
        %v504 = vpack.i.b16 %v503, %v502
        %v507 = vpack.i.b16 %v498, %v496
        %v508 = vshrl.u32 %v496, 16
        %v509 = vshrl.u32 %v498, 16
        %v510 = vpack.i.b16 %v509, %v508
        %v513 = vunpack.c.l.s4 1983009808
        %v514 = vunpack.c.0.s8 %v513
        %v515 = vperm.slane %v501, %v514
        %v518 = vunpack.c.l.s4 1983009808
        %v519 = vunpack.c.0.s8 %v518
        %v520 = vperm.slane %v507, %v519
        %v521 = vrot.slane %v520, 4
        %vm522 = vcmask 1047556
        %v523 = vsel %vm522, %v521, %v515
        %v524 = vrot.slane %v515, 4
        %v525 = vsel %vm522, %v520, %v524
        %v527 = vunpack.c.l.s4 1934713408
        %v528 = vunpack.c.0.s8 %v527
        %v529 = vperm.slane %v523, %v528
        %v531 = vunpack.c.l.s4 1934713408
        %v532 = vunpack.c.0.s8 %v531
        %v533 = vperm.slane %v525, %v532
        %v534 = vrot.slane %v529, 4
        %v535 = vsel %vm522, 0, %v534
        %v536 = vrot.slane %v533, 4
        %v537 = vsel %vm522, 0, %v536
        %v540 = vunpack.c.l.s4 1983009808
        %v541 = vunpack.c.0.s8 %v540
        %v542 = vperm.slane %v504, %v541
        %v545 = vunpack.c.l.s4 1983009808
        %v546 = vunpack.c.0.s8 %v545
        %v547 = vperm.slane %v510, %v546
        %v548 = vrot.slane %v547, 4
        %v549 = vsel %vm522, %v548, %v542
        %v550 = vrot.slane %v542, 4
        %v551 = vsel %vm522, %v547, %v550
        %v553 = vunpack.c.l.s4 1934713408
        %v554 = vunpack.c.0.s8 %v553
        %v555 = vperm.slane %v549, %v554
        %v557 = vunpack.c.l.s4 1934713408
        %v558 = vunpack.c.0.s8 %v557
        %v559 = vperm.slane %v551, %v558
        %v560 = vrot.slane %v555, 4
        %v561 = vsel %vm522, 0, %v560
        %v562 = vrot.slane %v559, 4
        %v563 = vsel %vm522, 0, %v562
        %v564 = vsel %vm522, %v536, %v529
        %v566 = vunpack.c.l.s4 1983009808
        %v567 = vunpack.c.0.s8 %v566
        %v568 = vperm.slane %v564, %v567
        %v569 = vrot.slane %v537, 4
        %v570 = vsel %vm522, %v569, %v535
        %v572 = vunpack.c.l.s4 1983009808
        %v573 = vunpack.c.0.s8 %v572
        %v574 = vperm.slane %v570, %v573
        %v575 = vrot.slane %v574, 4
        %v576 = vsel %vm522, %v575, %v568
        %v578 = vunpack.c.l.s4 1934713408
        %v579 = vunpack.c.0.s8 %v578
        %v580 = vperm.slane %v576, %v579
        %v581 = vrot.slane %v580, 4
        %v582 = vsel %vm522, 0, %v581
        %v583 = vsel %vm522, %v562, %v555
        %v585 = vunpack.c.l.s4 1983009808
        %v586 = vunpack.c.0.s8 %v585
        %v587 = vperm.slane %v583, %v586
        %v588 = vrot.slane %v563, 4
        %v589 = vsel %vm522, %v588, %v561
        %v591 = vunpack.c.l.s4 1983009808
        %v592 = vunpack.c.0.s8 %v591
        %v593 = vperm.slane %v589, %v592
        %v594 = vrot.slane %v593, 4
        %v595 = vsel %vm522, %v594, %v587
        %v597 = vunpack.c.l.s4 1934713408
        %v598 = vunpack.c.0.s8 %v597
        %v599 = vperm.slane %v595, %v598
        %v600 = vrot.slane %v599, 4
        %v601 = vsel %vm522, 0, %v600
        %v604 = vpack.i.b16 %v599, %v580
        %v605 = vshrl.u32 %v580, 16
        %v606 = vshrl.u32 %v599, 16
        %v607 = vpack.i.b16 %v606, %v605
        %v610 = vpack.i.b16 %v601, %v582
        %v611 = vshrl.u32 %v582, 16
        %v612 = vshrl.u32 %v601, 16
        %v613 = vpack.i.b16 %v612, %v611
        %614 = vrot.lane.b32.xlu0 %v491, 96
        %v615 = vpop.permute.xlu0 %614
        %616 = vrot.lane.b32.xlu0 %v494, 96
        %v617 = vpop.permute.xlu0 %616
        %618 = vrot.lane.b32.xlu0 %v496, 96
        %v619 = vpop.permute.xlu0 %618
        %620 = vrot.lane.b32.xlu0 %v498, 96
        %v621 = vpop.permute.xlu0 %620
        %v624 = vpack.i.b16 %v617, %v615
        %v625 = vshrl.u32 %v615, 16
        %v626 = vshrl.u32 %v617, 16
        %v627 = vpack.i.b16 %v626, %v625
        %v630 = vpack.i.b16 %v621, %v619
        %v631 = vshrl.u32 %v619, 16
        %v632 = vshrl.u32 %v621, 16
        %v633 = vpack.i.b16 %v632, %v631
        %v636 = vunpack.c.l.s4 1983009808
        %v637 = vunpack.c.0.s8 %v636
        %v638 = vperm.slane %v624, %v637
        %v641 = vunpack.c.l.s4 1983009808
        %v642 = vunpack.c.0.s8 %v641
        %v643 = vperm.slane %v630, %v642
        %v644 = vrot.slane %v643, 4
        %v645 = vsel %vm522, %v644, %v638
        %v646 = vrot.slane %v638, 4
        %v647 = vsel %vm522, %v643, %v646
        %v649 = vunpack.c.l.s4 1934713408
        %v650 = vunpack.c.0.s8 %v649
        %v651 = vperm.slane %v645, %v650
        %v653 = vunpack.c.l.s4 1934713408
        %v654 = vunpack.c.0.s8 %v653
        %v655 = vperm.slane %v647, %v654
        %v656 = vrot.slane %v651, 4
        %v657 = vsel %vm522, 0, %v656
        %v658 = vrot.slane %v655, 4
        %v659 = vsel %vm522, 0, %v658
        %v662 = vunpack.c.l.s4 1983009808
        %v663 = vunpack.c.0.s8 %v662
        %v664 = vperm.slane %v627, %v663
        %v667 = vunpack.c.l.s4 1983009808
        %v668 = vunpack.c.0.s8 %v667
        %v669 = vperm.slane %v633, %v668
        %v670 = vrot.slane %v669, 4
        %v671 = vsel %vm522, %v670, %v664
        %v672 = vrot.slane %v664, 4
        %v673 = vsel %vm522, %v669, %v672
        %v675 = vunpack.c.l.s4 1934713408
        %v676 = vunpack.c.0.s8 %v675
        %v677 = vperm.slane %v671, %v676
        %v679 = vunpack.c.l.s4 1934713408
        %v680 = vunpack.c.0.s8 %v679
        %v681 = vperm.slane %v673, %v680
        %v682 = vrot.slane %v677, 4
        %v683 = vsel %vm522, 0, %v682
        %v684 = vrot.slane %v681, 4
        %v685 = vsel %vm522, 0, %v684
        %v686 = vsel %vm522, %v658, %v651
        %v688 = vunpack.c.l.s4 1983009808
        %v689 = vunpack.c.0.s8 %v688
        %v690 = vperm.slane %v686, %v689
        %v691 = vrot.slane %v659, 4
        %v692 = vsel %vm522, %v691, %v657
        %v694 = vunpack.c.l.s4 1983009808
        %v695 = vunpack.c.0.s8 %v694
        %v696 = vperm.slane %v692, %v695
        %v697 = vrot.slane %v696, 4
        %v698 = vsel %vm522, %v697, %v690
        %v700 = vunpack.c.l.s4 1934713408
        %v701 = vunpack.c.0.s8 %v700
        %v702 = vperm.slane %v698, %v701
        %v703 = vrot.slane %v702, 4
        %v704 = vsel %vm522, 0, %v703
        %v705 = vsel %vm522, %v684, %v677
        %v707 = vunpack.c.l.s4 1983009808
        %v708 = vunpack.c.0.s8 %v707
        %v709 = vperm.slane %v705, %v708
        %v710 = vrot.slane %v685, 4
        %v711 = vsel %vm522, %v710, %v683
        %v713 = vunpack.c.l.s4 1983009808
        %v714 = vunpack.c.0.s8 %v713
        %v715 = vperm.slane %v711, %v714
        %v716 = vrot.slane %v715, 4
        %v717 = vsel %vm522, %v716, %v709
        %v719 = vunpack.c.l.s4 1934713408
        %v720 = vunpack.c.0.s8 %v719
        %v721 = vperm.slane %v717, %v720
        %v722 = vrot.slane %v721, 4
        %v723 = vsel %vm522, 0, %v722
        %v726 = vpack.i.b16 %v721, %v702
        %v727 = vshrl.u32 %v702, 16
        %v728 = vshrl.u32 %v721, 16
        %v729 = vpack.i.b16 %v728, %v727
        %v732 = vpack.i.b16 %v723, %v704
        %v733 = vshrl.u32 %v704, 16
        %v734 = vshrl.u32 %v723, 16
        %v735 = vpack.i.b16 %v734, %v733
        %736 = vrot.lane.b32.xlu0 %v491, 64
        %v737 = vpop.permute.xlu0 %736
        %738 = vrot.lane.b32.xlu0 %v494, 64
        %v739 = vpop.permute.xlu0 %738
        %740 = vrot.lane.b32.xlu0 %v496, 64
        %v741 = vpop.permute.xlu0 %740
        %742 = vrot.lane.b32.xlu0 %v498, 64
        %v743 = vpop.permute.xlu0 %742
        %v746 = vpack.i.b16 %v739, %v737
        %v747 = vshrl.u32 %v737, 16
        %v748 = vshrl.u32 %v739, 16
        %v749 = vpack.i.b16 %v748, %v747
        %v752 = vpack.i.b16 %v743, %v741
        %v753 = vshrl.u32 %v741, 16
        %v754 = vshrl.u32 %v743, 16
        %v755 = vpack.i.b16 %v754, %v753
        %v758 = vunpack.c.l.s4 1983009808
        %v759 = vunpack.c.0.s8 %v758
        %v760 = vperm.slane %v746, %v759
        %v763 = vunpack.c.l.s4 1983009808
        %v764 = vunpack.c.0.s8 %v763
        %v765 = vperm.slane %v752, %v764
        %v766 = vrot.slane %v765, 4
        %v767 = vsel %vm522, %v766, %v760
        %v768 = vrot.slane %v760, 4
        %v769 = vsel %vm522, %v765, %v768
        %v771 = vunpack.c.l.s4 1934713408
        %v772 = vunpack.c.0.s8 %v771
        %v773 = vperm.slane %v767, %v772
        %v775 = vunpack.c.l.s4 1934713408
        %v776 = vunpack.c.0.s8 %v775
        %v777 = vperm.slane %v769, %v776
        %v778 = vrot.slane %v773, 4
        %v779 = vsel %vm522, 0, %v778
        %v780 = vrot.slane %v777, 4
        %v781 = vsel %vm522, 0, %v780
        %v784 = vunpack.c.l.s4 1983009808
        %v785 = vunpack.c.0.s8 %v784
        %v786 = vperm.slane %v749, %v785
        %v789 = vunpack.c.l.s4 1983009808
        %v790 = vunpack.c.0.s8 %v789
        %v791 = vperm.slane %v755, %v790
        %v792 = vrot.slane %v791, 4
        %v793 = vsel %vm522, %v792, %v786
        %v794 = vrot.slane %v786, 4
        %v795 = vsel %vm522, %v791, %v794
        %v797 = vunpack.c.l.s4 1934713408
        %v798 = vunpack.c.0.s8 %v797
        %v799 = vperm.slane %v793, %v798
        %v801 = vunpack.c.l.s4 1934713408
        %v802 = vunpack.c.0.s8 %v801
        %v803 = vperm.slane %v795, %v802
        %v804 = vrot.slane %v799, 4
        %v805 = vsel %vm522, 0, %v804
        %v806 = vrot.slane %v803, 4
        %v807 = vsel %vm522, 0, %v806
        %v808 = vsel %vm522, %v780, %v773
        %v810 = vunpack.c.l.s4 1983009808
        %v811 = vunpack.c.0.s8 %v810
        %v812 = vperm.slane %v808, %v811
        %v813 = vrot.slane %v781, 4
        %v814 = vsel %vm522, %v813, %v779
        %v816 = vunpack.c.l.s4 1983009808
        %v817 = vunpack.c.0.s8 %v816
        %v818 = vperm.slane %v814, %v817
        %v819 = vrot.slane %v818, 4
        %v820 = vsel %vm522, %v819, %v812
        %v822 = vunpack.c.l.s4 1934713408
        %v823 = vunpack.c.0.s8 %v822
        %v824 = vperm.slane %v820, %v823
        %v825 = vrot.slane %v824, 4
        %v826 = vsel %vm522, 0, %v825
        %v827 = vsel %vm522, %v806, %v799
        %v829 = vunpack.c.l.s4 1983009808
        %v830 = vunpack.c.0.s8 %v829
        %v831 = vperm.slane %v827, %v830
        %v832 = vrot.slane %v807, 4
        %v833 = vsel %vm522, %v832, %v805
        %v835 = vunpack.c.l.s4 1983009808
        %v836 = vunpack.c.0.s8 %v835
        %v837 = vperm.slane %v833, %v836
        %v838 = vrot.slane %v837, 4
        %v839 = vsel %vm522, %v838, %v831
        %v841 = vunpack.c.l.s4 1934713408
        %v842 = vunpack.c.0.s8 %v841
        %v843 = vperm.slane %v839, %v842
        %v844 = vrot.slane %v843, 4
        %v845 = vsel %vm522, 0, %v844
        %v848 = vpack.i.b16 %v843, %v824
        %v849 = vshrl.u32 %v824, 16
        %v850 = vshrl.u32 %v843, 16
        %v851 = vpack.i.b16 %v850, %v849
        %v854 = vpack.i.b16 %v845, %v826
        %v855 = vshrl.u32 %v826, 16
        %v856 = vshrl.u32 %v845, 16
        %v857 = vpack.i.b16 %v856, %v855
        %vm858 = vcmask 64512
        %v860 = vsel %vm858, %v604, 0
        %v863 = vsel %vm858, %v726, 0
        %865 = vmatpush.bf16.xpose.msra.mxu0 0
        %866 = vmatpush.bf16.xpose.msra.mxu0 0
        %867 = vmatpush.bf16.xpose.msra.mxu0 0
        %868 = vmatpush.bf16.xpose.msra.mxu0 0
        %869 = vmatpush.bf16.xpose.msra.mxu0 0
        %870 = vmatpush.bf16.xpose.msra.mxu0 0
        %871 = vmatpush.bf16.xpose.msra.mxu0 0
        %872 = vmatpush.bf16.xpose.msra.mxu0 %v863
        %873 = vmatmul.bf16.gmra.mxu0 %v860
        %v874 = vpop.f32.mrf.mxu0
        %v875 = vadd.f32 0.0, %v874
        %v876 = vpop.f32.mrf.mxu0
        %877 = vdwg.mxu0
        %v879 = vsel %vm858, %v607, 0
        %v882 = vsel %vm858, %v729, 0
        %884 = vmatpush.bf16.xpose.msra.mxu0 0
        %885 = vmatpush.bf16.xpose.msra.mxu0 0
        %886 = vmatpush.bf16.xpose.msra.mxu0 0
        %887 = vmatpush.bf16.xpose.msra.mxu0 0
        %888 = vmatpush.bf16.xpose.msra.mxu0 0
        %889 = vmatpush.bf16.xpose.msra.mxu0 0
        %890 = vmatpush.bf16.xpose.msra.mxu0 0
        %891 = vmatpush.bf16.xpose.msra.mxu0 %v882
        %892 = vmatmul.bf16.gmra.mxu0 %v879
        %v893 = vpop.f32.mrf.mxu0
        %v894 = vadd.f32 0.0, %v893
        %v895 = vpop.f32.mrf.mxu0
        %896 = vdwg.mxu0
        %v898 = vsel %vm858, %v610, 0
        %v901 = vsel %vm858, %v732, 0
        %903 = vmatpush.bf16.xpose.msra.mxu0 0
        %904 = vmatpush.bf16.xpose.msra.mxu0 0
        %905 = vmatpush.bf16.xpose.msra.mxu0 0
        %906 = vmatpush.bf16.xpose.msra.mxu0 0
        %907 = vmatpush.bf16.xpose.msra.mxu0 0
        %908 = vmatpush.bf16.xpose.msra.mxu0 0
        %909 = vmatpush.bf16.xpose.msra.mxu0 0
        %910 = vmatpush.bf16.xpose.msra.mxu0 %v901
        %911 = vmatmul.bf16.gmra.mxu0 %v898
        %v912 = vpop.f32.mrf.mxu0
        %v913 = vadd.f32 0.0, %v912
        %v914 = vpop.f32.mrf.mxu0
        %915 = vdwg.mxu0
        %v917 = vsel %vm858, %v613, 0
        %v920 = vsel %vm858, %v735, 0
        %922 = vmatpush.bf16.xpose.msra.mxu0 0
        %923 = vmatpush.bf16.xpose.msra.mxu0 0
        %924 = vmatpush.bf16.xpose.msra.mxu0 0
        %925 = vmatpush.bf16.xpose.msra.mxu0 0
        %926 = vmatpush.bf16.xpose.msra.mxu0 0
        %927 = vmatpush.bf16.xpose.msra.mxu0 0
        %928 = vmatpush.bf16.xpose.msra.mxu0 0
        %929 = vmatpush.bf16.xpose.msra.mxu0 %v920
        %930 = vmatmul.bf16.gmra.mxu0 %v917
        %v931 = vpop.f32.mrf.mxu0
        %v932 = vadd.f32 0.0, %v931
        %v933 = vpop.f32.mrf.mxu0
        %934 = vdwg.mxu0
        %v936 = vperm.slane %v406, 0
        %v938 = vsub.f32 %v875, %v936
        %v939 = vsub.f32 %v894, %v936
        %v940 = vsub.f32 %v913, %v936
        %v941 = vsub.f32 %v932, %v936
        %v942 = vsel %vm858, %v938, -inf
        %943 = vmax.xlane.f32.xlu0 %v942
        %v944 = vpop.xlane.xlu0 %943
        %v945 = vsel %vm858, %v939, -inf
        %946 = vmax.xlane.f32.xlu0 %v945
        %v947 = vpop.xlane.xlu0 %946
        %v948 = vsel %vm858, %v940, -inf
        %949 = vmax.xlane.f32.xlu0 %v948
        %v950 = vpop.xlane.xlu0 %949
        %v951 = vsel %vm858, %v941, -inf
        %952 = vmax.xlane.f32.xlu0 %v951
        %v953 = vpop.xlane.xlu0 %952
        %v954 = vsub.f32 %v938, %v944
        %v955 = vsub.f32 %v939, %v947
        %v956 = vsub.f32 %v940, %v950
        %v957 = vsub.f32 %v941, %v953
        %v958 = vmul.f32 %v954, 1.442695
        %v959 = vpow.pop %v958
        %v960 = vmul.f32 %v955, 1.442695
        %v961 = vpow.pop %v960
        %v962 = vmul.f32 %v956, 1.442695
        %v963 = vpow.pop %v962
        %v964 = vmul.f32 %v957, 1.442695
        %v965 = vpow.pop %v964
        %v966 = vsel %vm858, %v959, 0.0
        %967 = vadd.xlane.f32.xlu0 %v966
        %v968 = vpop.xlane.xlu0 %967
        %v969 = vsel %vm858, %v961, 0.0
        %970 = vadd.xlane.f32.xlu0 %v969
        %v971 = vpop.xlane.xlu0 %970
        %v972 = vsel %vm858, %v963, 0.0
        %973 = vadd.xlane.f32.xlu0 %v972
        %v974 = vpop.xlane.xlu0 %973
        %v975 = vsel %vm858, %v965, 0.0
        %976 = vadd.xlane.f32.xlu0 %v975
        %v977 = vpop.xlane.xlu0 %976
        %v978 = vrcp.pop %v968
        %v979 = vrcp.pop %v971
        %v980 = vrcp.pop %v974
        %v981 = vrcp.pop %v977
        %v982 = vmul.f32 %v959, %v978
        %v983 = vmul.f32 %v961, %v979
        %v984 = vmul.f32 %v963, %v980
        %v985 = vmul.f32 %v965, %v981
        %v986 = vpack.c.bf16 %v982, %v982
        %v987 = vpack.c.bf16 %v983, %v983
        %v988 = vpack.c.bf16 %v984, %v984
        %v989 = vpack.c.bf16 %v985, %v985
        %v991 = vsel %vm858, %v986, 0
        %vm993 = vcmask 1043456
        %v995 = vsel %vm993, %v848, 0
        %997 = vmatpush.bf16.msra.mxu0 0
        %998 = vmatpush.bf16.msra.mxu0 0
        %999 = vmatpush.bf16.msra.mxu0 0
        %1000 = vmatpush.bf16.msra.mxu0 0
        %1001 = vmatpush.bf16.msra.mxu0 0
        %1002 = vmatpush.bf16.msra.mxu0 0
        %1003 = vmatpush.bf16.msra.mxu0 0
        %1004 = vmatpush.bf16.msra.mxu0 %v995
        %1005 = vmatmul.bf16.gmra.mxu0 %v991
        %v1006 = vpop.f32.mrf.mxu0
        %v1007 = vadd.f32 0.0, %v1006
        %v1008 = vpop.f32.mrf.mxu0
        %1009 = vdwg.mxu0
        %v1011 = vsel %vm858, %v987, 0
        %v1014 = vsel %vm993, %v851, 0
        %1016 = vmatpush.bf16.msra.mxu0 0
        %1017 = vmatpush.bf16.msra.mxu0 0
        %1018 = vmatpush.bf16.msra.mxu0 0
        %1019 = vmatpush.bf16.msra.mxu0 0
        %1020 = vmatpush.bf16.msra.mxu0 0
        %1021 = vmatpush.bf16.msra.mxu0 0
        %1022 = vmatpush.bf16.msra.mxu0 0
        %1023 = vmatpush.bf16.msra.mxu0 %v1014
        %1024 = vmatmul.bf16.gmra.mxu0 %v1011
        %v1025 = vpop.f32.mrf.mxu0
        %v1026 = vadd.f32 0.0, %v1025
        %v1027 = vpop.f32.mrf.mxu0
        %1028 = vdwg.mxu0
        %v1030 = vsel %vm858, %v988, 0
        %v1033 = vsel %vm993, %v854, 0
        %1035 = vmatpush.bf16.msra.mxu0 0
        %1036 = vmatpush.bf16.msra.mxu0 0
        %1037 = vmatpush.bf16.msra.mxu0 0
        %1038 = vmatpush.bf16.msra.mxu0 0
        %1039 = vmatpush.bf16.msra.mxu0 0
        %1040 = vmatpush.bf16.msra.mxu0 0
        %1041 = vmatpush.bf16.msra.mxu0 0
        %1042 = vmatpush.bf16.msra.mxu0 %v1033
        %1043 = vmatmul.bf16.gmra.mxu0 %v1030
        %v1044 = vpop.f32.mrf.mxu0
        %v1045 = vadd.f32 0.0, %v1044
        %v1046 = vpop.f32.mrf.mxu0
        %1047 = vdwg.mxu0
        %v1049 = vsel %vm858, %v989, 0
        %v1052 = vsel %vm993, %v857, 0
        %1054 = vmatpush.bf16.msra.mxu0 0
        %1055 = vmatpush.bf16.msra.mxu0 0
        %1056 = vmatpush.bf16.msra.mxu0 0
        %1057 = vmatpush.bf16.msra.mxu0 0
        %1058 = vmatpush.bf16.msra.mxu0 0
        %1059 = vmatpush.bf16.msra.mxu0 0
        %1060 = vmatpush.bf16.msra.mxu0 0
        %1061 = vmatpush.bf16.msra.mxu0 %v1052
        %1062 = vmatmul.bf16.gmra.mxu0 %v1049
        %v1063 = vpop.f32.mrf.mxu0
        %v1064 = vadd.f32 0.0, %v1063
        %v1065 = vpop.f32.mrf.mxu0
        %1066 = vdwg.mxu0
        %v1067 = vrot.slane %v1045, 4
        %vm1068 = vcmask 1047556
        %v1069 = vsel %vm1068, %v1067, %v1007
        %v1070 = vrot.slane %v1007, 4
        %v1071 = vsel %vm1068, %v1045, %v1070
        %v1073 = vunpack.c.l.s4 1983009808
        %v1074 = vunpack.c.0.s8 %v1073
        %v1075 = vperm.slane %v1069, %v1074
        %v1077 = vunpack.c.l.s4 1983009808
        %v1078 = vunpack.c.0.s8 %v1077
        %v1079 = vperm.slane %v1071, %v1078
        %v1080 = vrot.slane %v1064, 4
        %v1081 = vsel %vm1068, %v1080, %v1026
        %v1082 = vrot.slane %v1026, 4
        %v1083 = vsel %vm1068, %v1064, %v1082
        %v1085 = vunpack.c.l.s4 1983009808
        %v1086 = vunpack.c.0.s8 %v1085
        %v1087 = vperm.slane %v1081, %v1086
        %v1089 = vunpack.c.l.s4 1983009808
        %v1090 = vunpack.c.0.s8 %v1089
        %v1091 = vperm.slane %v1083, %v1090
        %v1092 = vrot.slane %v1087, 4
        %v1093 = vsel %vm1068, %v1092, %v1075
        %v1094 = vrot.slane %v1075, 4
        %v1095 = vsel %vm1068, %v1087, %v1094
        %v1097 = vunpack.c.l.s4 1934713408
        %v1098 = vunpack.c.0.s8 %v1097
        %v1099 = vperm.slane %v1093, %v1098
        %v1101 = vunpack.c.l.s4 1934713408
        %v1102 = vunpack.c.0.s8 %v1101
        %v1103 = vperm.slane %v1095, %v1102
        %v1104 = vrot.slane %v1091, 4
        %v1105 = vsel %vm1068, %v1104, %v1079
        %v1106 = vrot.slane %v1079, 4
        %v1107 = vsel %vm1068, %v1091, %v1106
        %v1109 = vunpack.c.l.s4 1934713408
        %v1110 = vunpack.c.0.s8 %v1109
        %v1111 = vperm.slane %v1105, %v1110
        %v1113 = vunpack.c.l.s4 1934713408
        %v1114 = vunpack.c.0.s8 %v1113
        %v1115 = vperm.slane %v1107, %v1114
        %v1116 = vrot.slane %v1099, 4
        %v1117 = vsel %vm1068, 0.0, %v1116
        %v1118 = vrot.slane %v1103, 4
        %v1119 = vsel %vm1068, 0.0, %v1118
        %v1120 = vrot.slane %v1111, 4
        %v1121 = vsel %vm1068, 0.0, %v1120
        %v1122 = vrot.slane %v1115, 4
        %v1123 = vsel %vm1068, 0.0, %v1122
        %v1124 = vsel %vm1068, %v1118, %v1099
        %v1126 = vunpack.c.l.s4 1983009808
        %v1127 = vunpack.c.0.s8 %v1126
        %v1128 = vperm.slane %v1124, %v1127
        %v1129 = vrot.slane %v1119, 4
        %v1130 = vsel %vm1068, %v1129, %v1117
        %v1132 = vunpack.c.l.s4 1983009808
        %v1133 = vunpack.c.0.s8 %v1132
        %v1134 = vperm.slane %v1130, %v1133
        %v1135 = vsel %vm1068, %v1122, %v1111
        %v1137 = vunpack.c.l.s4 1983009808
        %v1138 = vunpack.c.0.s8 %v1137
        %v1139 = vperm.slane %v1135, %v1138
        %v1140 = vrot.slane %v1123, 4
        %v1141 = vsel %vm1068, %v1140, %v1121
        %v1143 = vunpack.c.l.s4 1983009808
        %v1144 = vunpack.c.0.s8 %v1143
        %v1145 = vperm.slane %v1141, %v1144
        %v1146 = vrot.slane %v1134, 4
        %v1147 = vsel %vm1068, %v1146, %v1128
        %v1148 = vrot.slane %v1128, 4
        %v1149 = vsel %vm1068, %v1134, %v1148
        %v1151 = vunpack.c.l.s4 1934713408
        %v1152 = vunpack.c.0.s8 %v1151
        %v1153 = vperm.slane %v1147, %v1152
        %v1155 = vunpack.c.l.s4 1934713408
        %v1156 = vunpack.c.0.s8 %v1155
        %v1157 = vperm.slane %v1149, %v1156
        %v1158 = vrot.slane %v1145, 4
        %v1159 = vsel %vm1068, %v1158, %v1139
        %v1160 = vrot.slane %v1139, 4
        %v1161 = vsel %vm1068, %v1145, %v1160
        %v1163 = vunpack.c.l.s4 1934713408
        %v1164 = vunpack.c.0.s8 %v1163
        %v1165 = vperm.slane %v1159, %v1164
        %v1167 = vunpack.c.l.s4 1934713408
        %v1168 = vunpack.c.0.s8 %v1167
        %v1169 = vperm.slane %v1161, %v1168
        %v1170 = vrot.slane %v1165, 4
        %v1171 = vsel %vm1068, %v1170, %v1153
        %v1172 = vrot.slane %v1153, 4
        %v1173 = vsel %vm1068, %v1165, %v1172
        %v1174 = vrot.slane %v1169, 4
        %v1175 = vsel %vm1068, %v1174, %v1157
        %v1176 = vrot.slane %v1157, 4
        %v1177 = vsel %vm1068, %v1169, %v1176
        %1179 = vrot.lane.b32.xlu0 %v1173, 8
        %v1180 = vpop.permute.xlu0 %1179
        %1183 = vrot.lane.b32.xlu0 %v1175, 16
        %v1184 = vpop.permute.xlu0 %1183
        %1187 = vrot.lane.b32.xlu0 %v1177, 24
        %v1188 = vpop.permute.xlu0 %1187
        %v1190 = vsel %vm858, %v1171, %v1180
        %vm1191 = vcmask 130048
        %v1192 = vsel %vm1191, %v1190, %v1184
        %vm1193 = vcmask 195584
        %v1194 = vsel %vm1193, %v1192, %v1188
        %v1195 = vpack.c.bf16 %v1194, %v1194
        %v1200 = vunpack.c.l.b16 %v411
        %v1201 = vunpack.c.l.b16 %v412
        %v1202 = vunpack.c.l.b16 %v413
        %v1203 = vunpack.c.l.b16 %v414
        %v1204 = vpack.c.b16 %v1201, %v1200
        %v1205 = vpack.c.b16 %v1203, %v1202
        %v1209 = vsel %vm428, %v1195, 0
        %1211 = vmatpush.bf16.msra.mxu0 0
        %1212 = vmatpush.bf16.msra.mxu0 0
        %1213 = vmatpush.bf16.msra.mxu0 0
        %1214 = vmatpush.bf16.msra.mxu0 0
        %1215 = vmatpush.bf16.msra.mxu0 0
        %1216 = vmatpush.bf16.msra.mxu0 0
        %1217 = vmatpush.bf16.msra.mxu0 %v1205
        %1218 = vmatpush.bf16.msra.mxu0 %v1204
        %1219 = vmatmul.bf16.gmra.mxu0 %v1209
        %v1220 = vpop.f32.mrf.mxu0
        %v1221 = vadd.f32 %v396, %v1220
        %v1222 = vpop.f32.mrf.mxu0
        %1223 = vdwg.mxu0
        %v1224 = vadd.f32 %v1194, %v1221
        %v1225 = vsel %vm428, %v1224, 0.0
        %1226 = vadd.xlane.f32.xlu0 %v1225
        %v1227 = vpop.xlane.xlu0 %1226
        %v1228 = vmul.f32 %v1227, %v438
        %v1229 = vsub.f32 %v1224, %v1228
        %v1230 = vmul.f32 %v1229, %v1229
        %v1231 = vsel %vm428, %v1230, 0.0
        %1232 = vadd.xlane.f32.xlu0 %v1231
        %v1233 = vpop.xlane.xlu0 %1232
        %v1234 = vmul.f32 %v1233, %v438
        %v1235 = vadd.f32 %v1234, 1e-05
        %v1236 = vrsqrt.pop %v1235
        %v1237 = vmul.f32 %v1236, %v1235
        %v1238 = vmul.f32 %v1237, %v1236
        %v1239 = vmul.f32 0.5, %v1238
        %v1240 = vsub.f32 1.5, %v1239
        %v1241 = vmul.f32 %v1236, %v1240
        %vm1242 = vweird.f32 %v1235
        %vm1243 = vweird.f32 %v1236
        %vm1244 = vmor %vm1242, %vm1243
        %v1245 = vsel %vm1244, %v1236, %v1241
        %v1246 = vmul.f32 %v1229, %v1245
        %v1247 = vperm.slane %v395, 3
        %v1248 = vmul.f32 %v1246, %v1247
        %v1249 = vperm.slane %v395, 4
        %v1250 = vadd.f32 %v1248, %v1249
        %v1251 = vpack.c.bf16 %v1250, %v1250
        %v1256 = vunpack.c.l.b16 %v415
        %v1257 = vunpack.c.l.b16 %v416
        %v1258 = vunpack.c.l.b16 %v417
        %v1259 = vunpack.c.l.b16 %v418
        %v1260 = vpack.c.b16 %v1257, %v1256
        %v1261 = vpack.c.b16 %v1259, %v1258
        %v1265 = vsel %vm428, %v1251, 0
        %1267 = vmatpush.bf16.msra.mxu0 0
        %1268 = vmatpush.bf16.msra.mxu0 0
        %1269 = vmatpush.bf16.msra.mxu0 0
        %1270 = vmatpush.bf16.msra.mxu0 0
        %1271 = vmatpush.bf16.msra.mxu0 0
        %1272 = vmatpush.bf16.msra.mxu0 0
        %1273 = vmatpush.bf16.msra.mxu0 %v1261
        %1274 = vmatpush.bf16.msra.mxu0 %v1260
        %1275 = vmatmul.bf16.gmra.mxu0 %v1265
        %v1276 = vpop.f32.mrf.mxu0
        %v1277 = vadd.f32 %v400, %v1276
        %v1278 = vpop.f32.mrf.mxu0
        %1279 = vdwg.mxu0
        %v1280 = vmul.f32 %v1277, 0.5
        %v1281 = vmul.f32 %v1277, 0.70710677
        %v1282 = vand.u32 2147483647, %v1281
        %v1283 = vmul.f32 %v1282, 0.3275911
        %v1284 = vadd.f32 %v1283, 1.0
        %v1285 = vrcp.pop %v1284
        %v1286 = vmul.f32 %v1284, %v1285
        %v1287 = vsub.f32 1.0, %v1286
        %v1288 = vmul.f32 %v1285, %v1287
        %v1289 = vadd.f32 %v1285, %v1288
        %vm1290 = vweird.f32 %v1284
        %vm1291 = vweird.f32 %v1285
        %vm1292 = vmor %vm1290, %vm1291
        %v1293 = vsel %vm1292, %v1285, %v1289
        %v1294 = vand.u32 2147483647, %v1284
        %vm1295 = vcmp.eq.f32.partialorder %v1294, 8.507059e+37
        %v1296 = vand.u32 %v1284, 2147483648
        %v1297 = vor.u32 1.1754944e-38, %v1296
        %v1298 = vsel %vm1295, %v1297, %v1293
        %v1299 = vmul.f32 1.0, %v1298
        %v1300 = vmul.f32 %v1299, 1.0614054
        %v1301 = vadd.f32 %v1300, -1.4531521
        %v1302 = vmul.f32 %v1301, %v1299
        %v1303 = vadd.f32 %v1302, 1.4214138
        %v1304 = vmul.f32 %v1303, %v1299
        %v1305 = vadd.f32 %v1304, -0.28449672
        %v1306 = vmul.f32 %v1305, %v1299
        %v1307 = vadd.f32 %v1306, 0.2548296
        %v1308 = vmul.f32 %v1307, %v1299
        %v1309 = vsub.f32 0.0, %v1282
        %v1310 = vmul.f32 %v1309, %v1282
        %v1311 = vmul.f32 %v1310, 1.442695
        %v1312 = vpow.pop %v1311
        %v1313 = vmul.f32 %v1308, %v1312
        %v1314 = vsub.f32 1.0, %v1313
        %vm1315 = vcmp.ge.f32.partialorder %v1281, 0.0
        %v1316 = vsub.f32 0.0, %v1314
        %v1317 = vsel %vm1315, %v1314, %v1316
        %v1318 = vadd.f32 %v1317, 1.0
        %v1319 = vmul.f32 %v1280, %v1318
        %v1320 = vpack.c.bf16 %v1319, %v1319
        %v1329 = vunpack.c.l.b16 %v419
        %v1330 = vunpack.c.l.b16 %v420
        %v1331 = vunpack.c.l.b16 %v421
        %v1332 = vunpack.c.l.b16 %v422
        %v1333 = vunpack.c.l.b16 %v423
        %v1334 = vunpack.c.l.b16 %v424
        %v1335 = vunpack.c.l.b16 %v425
        %v1336 = vunpack.c.l.b16 %v426
        %v1337 = vpack.c.b16 %v1330, %v1329
        %v1338 = vpack.c.b16 %v1332, %v1331
        %v1339 = vpack.c.b16 %v1334, %v1333
        %v1340 = vpack.c.b16 %v1336, %v1335
        %vm1345 = vcmask 523264
        %v1347 = vsel %vm1345, %v1320, 0
        %1349 = vmatpush.bf16.msra.mxu0 0
        %1350 = vmatpush.bf16.msra.mxu0 0
        %1351 = vmatpush.bf16.msra.mxu0 0
        %1352 = vmatpush.bf16.msra.mxu0 0
        %1353 = vmatpush.bf16.msra.mxu0 %v1340
        %1354 = vmatpush.bf16.msra.mxu0 %v1339
        %1355 = vmatpush.bf16.msra.mxu0 %v1338
        %1356 = vmatpush.bf16.msra.mxu0 %v1337
        %1357 = vmatmul.bf16.gmra.mxu0 %v1347
        %v1358 = vpop.f32.mrf.mxu0
        %v1359 = vadd.f32 %v397, %v1358
        %v1360 = vpop.f32.mrf.mxu0
        %1361 = vdwg.mxu0
        %v1362 = vadd.f32 %v1250, %v1359
        %v1363 = vsel %vm428, %v1362, 0.0
        %1364 = vadd.xlane.f32.xlu0 %v1363
        %v1365 = vpop.xlane.xlu0 %1364
        %v1366 = vmul.f32 %v1365, %v438
        %v1367 = vsub.f32 %v1362, %v1366
        %v1368 = vmul.f32 %v1367, %v1367
        %v1369 = vsel %vm428, %v1368, 0.0
        %1370 = vadd.xlane.f32.xlu0 %v1369
        %v1371 = vpop.xlane.xlu0 %1370
        %v1372 = vmul.f32 %v1371, %v438
        %v1373 = vadd.f32 %v1372, 1e-05
        %v1374 = vrsqrt.pop %v1373
        %v1375 = vmul.f32 %v1374, %v1373
        %v1376 = vmul.f32 %v1375, %v1374
        %v1377 = vmul.f32 0.5, %v1376
        %v1378 = vsub.f32 1.5, %v1377
        %v1379 = vmul.f32 %v1374, %v1378
        %vm1380 = vweird.f32 %v1373
        %vm1381 = vweird.f32 %v1374
        %vm1382 = vmor %vm1380, %vm1381
        %v1383 = vsel %vm1382, %v1374, %v1379
        %v1384 = vmul.f32 %v1367, %v1383
        %v1385 = vperm.slane %v395, 6
        %v1386 = vmul.f32 %v1384, %v1385
        %v1387 = vperm.slane %v395, 7
        %v1388 = vadd.f32 %v1386, %v1387
        %v1389 = vpack.c.bf16 %v1388, %v1388
        %v1391 = vsel %vm428, %v1389, 0
        %1393 = vmatpush.bf16.msra.mxu0 0
        %1394 = vmatpush.bf16.msra.mxu0 0
        %1395 = vmatpush.bf16.msra.mxu0 0
        %1396 = vmatpush.bf16.msra.mxu0 0
        %1397 = vmatpush.bf16.msra.mxu0 0
        %1398 = vmatpush.bf16.msra.mxu0 0
        %1399 = vmatpush.bf16.msra.mxu0 %v472
        %1400 = vmatpush.bf16.msra.mxu0 %v471
        %1401 = vmatmul.bf16.gmra.mxu0 %v1391
        %v1402 = vpop.f32.mrf.mxu0
        %v1403 = vadd.f32 %v404, %v1402
        %v1404 = vpop.f32.mrf.mxu0
        %1405 = vdwg.mxu0
        %v1406 = vpack.c.bf16 %v1403, %v1403
        %1408 = vrot.lane.b32.xlu0 %v1406, 120
        %v1409 = vpop.permute.xlu0 %1408
        %1410 = vrot.lane.b32.xlu0 %v1406, 112
        %v1411 = vpop.permute.xlu0 %1410
        %1412 = vrot.lane.b32.xlu0 %v1406, 104
        %v1413 = vpop.permute.xlu0 %1412
        %v1416 = vpack.i.b16 %v1409, %v1406
        %v1417 = vshrl.u32 %v1406, 16
        %v1418 = vshrl.u32 %v1409, 16
        %v1419 = vpack.i.b16 %v1418, %v1417
        %v1422 = vpack.i.b16 %v1413, %v1411
        %v1423 = vshrl.u32 %v1411, 16
        %v1424 = vshrl.u32 %v1413, 16
        %v1425 = vpack.i.b16 %v1424, %v1423
        %v1428 = vunpack.c.l.s4 1983009808
        %v1429 = vunpack.c.0.s8 %v1428
        %v1430 = vperm.slane %v1416, %v1429
        %v1433 = vunpack.c.l.s4 1983009808
        %v1434 = vunpack.c.0.s8 %v1433
        %v1435 = vperm.slane %v1422, %v1434
        %v1436 = vrot.slane %v1435, 4
        %v1437 = vsel %vm522, %v1436, %v1430
        %v1438 = vrot.slane %v1430, 4
        %v1439 = vsel %vm522, %v1435, %v1438
        %v1441 = vunpack.c.l.s4 1934713408
        %v1442 = vunpack.c.0.s8 %v1441
        %v1443 = vperm.slane %v1437, %v1442
        %v1445 = vunpack.c.l.s4 1934713408
        %v1446 = vunpack.c.0.s8 %v1445
        %v1447 = vperm.slane %v1439, %v1446
        %v1448 = vrot.slane %v1443, 4
        %v1449 = vsel %vm522, 0, %v1448
        %v1450 = vrot.slane %v1447, 4
        %v1451 = vsel %vm522, 0, %v1450
        %v1454 = vunpack.c.l.s4 1983009808
        %v1455 = vunpack.c.0.s8 %v1454
        %v1456 = vperm.slane %v1419, %v1455
        %v1459 = vunpack.c.l.s4 1983009808
        %v1460 = vunpack.c.0.s8 %v1459
        %v1461 = vperm.slane %v1425, %v1460
        %v1462 = vrot.slane %v1461, 4
        %v1463 = vsel %vm522, %v1462, %v1456
        %v1464 = vrot.slane %v1456, 4
        %v1465 = vsel %vm522, %v1461, %v1464
        %v1467 = vunpack.c.l.s4 1934713408
        %v1468 = vunpack.c.0.s8 %v1467
        %v1469 = vperm.slane %v1463, %v1468
        %v1471 = vunpack.c.l.s4 1934713408
        %v1472 = vunpack.c.0.s8 %v1471
        %v1473 = vperm.slane %v1465, %v1472
        %v1474 = vrot.slane %v1469, 4
        %v1475 = vsel %vm522, 0, %v1474
        %v1476 = vrot.slane %v1473, 4
        %v1477 = vsel %vm522, 0, %v1476
        %v1478 = vsel %vm522, %v1450, %v1443
        %v1480 = vunpack.c.l.s4 1983009808
        %v1481 = vunpack.c.0.s8 %v1480
        %v1482 = vperm.slane %v1478, %v1481
        %v1483 = vrot.slane %v1451, 4
        %v1484 = vsel %vm522, %v1483, %v1449
        %v1486 = vunpack.c.l.s4 1983009808
        %v1487 = vunpack.c.0.s8 %v1486
        %v1488 = vperm.slane %v1484, %v1487
        %v1489 = vrot.slane %v1488, 4
        %v1490 = vsel %vm522, %v1489, %v1482
        %v1492 = vunpack.c.l.s4 1934713408
        %v1493 = vunpack.c.0.s8 %v1492
        %v1494 = vperm.slane %v1490, %v1493
        %v1495 = vrot.slane %v1494, 4
        %v1496 = vsel %vm522, 0, %v1495
        %v1497 = vsel %vm522, %v1476, %v1469
        %v1499 = vunpack.c.l.s4 1983009808
        %v1500 = vunpack.c.0.s8 %v1499
        %v1501 = vperm.slane %v1497, %v1500
        %v1502 = vrot.slane %v1477, 4
        %v1503 = vsel %vm522, %v1502, %v1475
        %v1505 = vunpack.c.l.s4 1983009808
        %v1506 = vunpack.c.0.s8 %v1505
        %v1507 = vperm.slane %v1503, %v1506
        %v1508 = vrot.slane %v1507, 4
        %v1509 = vsel %vm522, %v1508, %v1501
        %v1511 = vunpack.c.l.s4 1934713408
        %v1512 = vunpack.c.0.s8 %v1511
        %v1513 = vperm.slane %v1509, %v1512
        %v1514 = vrot.slane %v1513, 4
        %v1515 = vsel %vm522, 0, %v1514
        %v1518 = vpack.i.b16 %v1513, %v1494
        %v1519 = vshrl.u32 %v1494, 16
        %v1520 = vshrl.u32 %v1513, 16
        %v1521 = vpack.i.b16 %v1520, %v1519
        %v1524 = vpack.i.b16 %v1515, %v1496
        %v1525 = vshrl.u32 %v1496, 16
        %v1526 = vshrl.u32 %v1515, 16
        %v1527 = vpack.i.b16 %v1526, %v1525
        %1528 = vrot.lane.b32.xlu0 %v1406, 96
        %v1529 = vpop.permute.xlu0 %1528
        %1530 = vrot.lane.b32.xlu0 %v1409, 96
        %v1531 = vpop.permute.xlu0 %1530
        %1532 = vrot.lane.b32.xlu0 %v1411, 96
        %v1533 = vpop.permute.xlu0 %1532
        %1534 = vrot.lane.b32.xlu0 %v1413, 96
        %v1535 = vpop.permute.xlu0 %1534
        %v1538 = vpack.i.b16 %v1531, %v1529
        %v1539 = vshrl.u32 %v1529, 16
        %v1540 = vshrl.u32 %v1531, 16
        %v1541 = vpack.i.b16 %v1540, %v1539
        %v1544 = vpack.i.b16 %v1535, %v1533
        %v1545 = vshrl.u32 %v1533, 16
        %v1546 = vshrl.u32 %v1535, 16
        %v1547 = vpack.i.b16 %v1546, %v1545
        %v1550 = vunpack.c.l.s4 1983009808
        %v1551 = vunpack.c.0.s8 %v1550
        %v1552 = vperm.slane %v1538, %v1551
        %v1555 = vunpack.c.l.s4 1983009808
        %v1556 = vunpack.c.0.s8 %v1555
        %v1557 = vperm.slane %v1544, %v1556
        %v1558 = vrot.slane %v1557, 4
        %v1559 = vsel %vm522, %v1558, %v1552
        %v1560 = vrot.slane %v1552, 4
        %v1561 = vsel %vm522, %v1557, %v1560
        %v1563 = vunpack.c.l.s4 1934713408
        %v1564 = vunpack.c.0.s8 %v1563
        %v1565 = vperm.slane %v1559, %v1564
        %v1567 = vunpack.c.l.s4 1934713408
        %v1568 = vunpack.c.0.s8 %v1567
        %v1569 = vperm.slane %v1561, %v1568
        %v1570 = vrot.slane %v1565, 4
        %v1571 = vsel %vm522, 0, %v1570
        %v1572 = vrot.slane %v1569, 4
        %v1573 = vsel %vm522, 0, %v1572
        %v1576 = vunpack.c.l.s4 1983009808
        %v1577 = vunpack.c.0.s8 %v1576
        %v1578 = vperm.slane %v1541, %v1577
        %v1581 = vunpack.c.l.s4 1983009808
        %v1582 = vunpack.c.0.s8 %v1581
        %v1583 = vperm.slane %v1547, %v1582
        %v1584 = vrot.slane %v1583, 4
        %v1585 = vsel %vm522, %v1584, %v1578
        %v1586 = vrot.slane %v1578, 4
        %v1587 = vsel %vm522, %v1583, %v1586
        %v1589 = vunpack.c.l.s4 1934713408
        %v1590 = vunpack.c.0.s8 %v1589
        %v1591 = vperm.slane %v1585, %v1590
        %v1593 = vunpack.c.l.s4 1934713408
        %v1594 = vunpack.c.0.s8 %v1593
        %v1595 = vperm.slane %v1587, %v1594
        %v1596 = vrot.slane %v1591, 4
        %v1597 = vsel %vm522, 0, %v1596
        %v1598 = vrot.slane %v1595, 4
        %v1599 = vsel %vm522, 0, %v1598
        %v1600 = vsel %vm522, %v1572, %v1565
        %v1602 = vunpack.c.l.s4 1983009808
        %v1603 = vunpack.c.0.s8 %v1602
        %v1604 = vperm.slane %v1600, %v1603
        %v1605 = vrot.slane %v1573, 4
        %v1606 = vsel %vm522, %v1605, %v1571
        %v1608 = vunpack.c.l.s4 1983009808
        %v1609 = vunpack.c.0.s8 %v1608
        %v1610 = vperm.slane %v1606, %v1609
        %v1611 = vrot.slane %v1610, 4
        %v1612 = vsel %vm522, %v1611, %v1604
        %v1614 = vunpack.c.l.s4 1934713408
        %v1615 = vunpack.c.0.s8 %v1614
        %v1616 = vperm.slane %v1612, %v1615
        %v1617 = vrot.slane %v1616, 4
        %v1618 = vsel %vm522, 0, %v1617
        %v1619 = vsel %vm522, %v1598, %v1591
        %v1621 = vunpack.c.l.s4 1983009808
        %v1622 = vunpack.c.0.s8 %v1621
        %v1623 = vperm.slane %v1619, %v1622
        %v1624 = vrot.slane %v1599, 4
        %v1625 = vsel %vm522, %v1624, %v1597
        %v1627 = vunpack.c.l.s4 1983009808
        %v1628 = vunpack.c.0.s8 %v1627
        %v1629 = vperm.slane %v1625, %v1628
        %v1630 = vrot.slane %v1629, 4
        %v1631 = vsel %vm522, %v1630, %v1623
        %v1633 = vunpack.c.l.s4 1934713408
        %v1634 = vunpack.c.0.s8 %v1633
        %v1635 = vperm.slane %v1631, %v1634
        %v1636 = vrot.slane %v1635, 4
        %v1637 = vsel %vm522, 0, %v1636
        %v1640 = vpack.i.b16 %v1635, %v1616
        %v1641 = vshrl.u32 %v1616, 16
        %v1642 = vshrl.u32 %v1635, 16
        %v1643 = vpack.i.b16 %v1642, %v1641
        %v1646 = vpack.i.b16 %v1637, %v1618
        %v1647 = vshrl.u32 %v1618, 16
        %v1648 = vshrl.u32 %v1637, 16
        %v1649 = vpack.i.b16 %v1648, %v1647
        %1650 = vrot.lane.b32.xlu0 %v1406, 64
        %v1651 = vpop.permute.xlu0 %1650
        %1652 = vrot.lane.b32.xlu0 %v1409, 64
        %v1653 = vpop.permute.xlu0 %1652
        %1654 = vrot.lane.b32.xlu0 %v1411, 64
        %v1655 = vpop.permute.xlu0 %1654
        %1656 = vrot.lane.b32.xlu0 %v1413, 64
        %v1657 = vpop.permute.xlu0 %1656
        %v1660 = vpack.i.b16 %v1653, %v1651
        %v1661 = vshrl.u32 %v1651, 16
        %v1662 = vshrl.u32 %v1653, 16
        %v1663 = vpack.i.b16 %v1662, %v1661
        %v1666 = vpack.i.b16 %v1657, %v1655
        %v1667 = vshrl.u32 %v1655, 16
        %v1668 = vshrl.u32 %v1657, 16
        %v1669 = vpack.i.b16 %v1668, %v1667
        %v1672 = vunpack.c.l.s4 1983009808
        %v1673 = vunpack.c.0.s8 %v1672
        %v1674 = vperm.slane %v1660, %v1673
        %v1677 = vunpack.c.l.s4 1983009808
        %v1678 = vunpack.c.0.s8 %v1677
        %v1679 = vperm.slane %v1666, %v1678
        %v1680 = vrot.slane %v1679, 4
        %v1681 = vsel %vm522, %v1680, %v1674
        %v1682 = vrot.slane %v1674, 4
        %v1683 = vsel %vm522, %v1679, %v1682
        %v1685 = vunpack.c.l.s4 1934713408
        %v1686 = vunpack.c.0.s8 %v1685
        %v1687 = vperm.slane %v1681, %v1686
        %v1689 = vunpack.c.l.s4 1934713408
        %v1690 = vunpack.c.0.s8 %v1689
        %v1691 = vperm.slane %v1683, %v1690
        %v1692 = vrot.slane %v1687, 4
        %v1693 = vsel %vm522, 0, %v1692
        %v1694 = vrot.slane %v1691, 4
        %v1695 = vsel %vm522, 0, %v1694
        %v1698 = vunpack.c.l.s4 1983009808
        %v1699 = vunpack.c.0.s8 %v1698
        %v1700 = vperm.slane %v1663, %v1699
        %v1703 = vunpack.c.l.s4 1983009808
        %v1704 = vunpack.c.0.s8 %v1703
        %v1705 = vperm.slane %v1669, %v1704
        %v1706 = vrot.slane %v1705, 4
        %v1707 = vsel %vm522, %v1706, %v1700
        %v1708 = vrot.slane %v1700, 4
        %v1709 = vsel %vm522, %v1705, %v1708
        %v1711 = vunpack.c.l.s4 1934713408
        %v1712 = vunpack.c.0.s8 %v1711
        %v1713 = vperm.slane %v1707, %v1712
        %v1715 = vunpack.c.l.s4 1934713408
        %v1716 = vunpack.c.0.s8 %v1715
        %v1717 = vperm.slane %v1709, %v1716
        %v1718 = vrot.slane %v1713, 4
        %v1719 = vsel %vm522, 0, %v1718
        %v1720 = vrot.slane %v1717, 4
        %v1721 = vsel %vm522, 0, %v1720
        %v1722 = vsel %vm522, %v1694, %v1687
        %v1724 = vunpack.c.l.s4 1983009808
        %v1725 = vunpack.c.0.s8 %v1724
        %v1726 = vperm.slane %v1722, %v1725
        %v1727 = vrot.slane %v1695, 4
        %v1728 = vsel %vm522, %v1727, %v1693
        %v1730 = vunpack.c.l.s4 1983009808
        %v1731 = vunpack.c.0.s8 %v1730
        %v1732 = vperm.slane %v1728, %v1731
        %v1733 = vrot.slane %v1732, 4
        %v1734 = vsel %vm522, %v1733, %v1726
        %v1736 = vunpack.c.l.s4 1934713408
        %v1737 = vunpack.c.0.s8 %v1736
        %v1738 = vperm.slane %v1734, %v1737
        %v1739 = vrot.slane %v1738, 4
        %v1740 = vsel %vm522, 0, %v1739
        %v1741 = vsel %vm522, %v1720, %v1713
        %v1743 = vunpack.c.l.s4 1983009808
        %v1744 = vunpack.c.0.s8 %v1743
        %v1745 = vperm.slane %v1741, %v1744
        %v1746 = vrot.slane %v1721, 4
        %v1747 = vsel %vm522, %v1746, %v1719
        %v1749 = vunpack.c.l.s4 1983009808
        %v1750 = vunpack.c.0.s8 %v1749
        %v1751 = vperm.slane %v1747, %v1750
        %v1752 = vrot.slane %v1751, 4
        %v1753 = vsel %vm522, %v1752, %v1745
        %v1755 = vunpack.c.l.s4 1934713408
        %v1756 = vunpack.c.0.s8 %v1755
        %v1757 = vperm.slane %v1753, %v1756
        %v1758 = vrot.slane %v1757, 4
        %v1759 = vsel %vm522, 0, %v1758
        %v1762 = vpack.i.b16 %v1757, %v1738
        %v1763 = vshrl.u32 %v1738, 16
        %v1764 = vshrl.u32 %v1757, 16
        %v1765 = vpack.i.b16 %v1764, %v1763
        %v1768 = vpack.i.b16 %v1759, %v1740
        %v1769 = vshrl.u32 %v1740, 16
        %v1770 = vshrl.u32 %v1759, 16
        %v1771 = vpack.i.b16 %v1770, %v1769
        %v1773 = vsel %vm858, %v1518, 0
        %v1776 = vsel %vm858, %v1640, 0
        %1778 = vmatpush.bf16.xpose.msra.mxu0 0
        %1779 = vmatpush.bf16.xpose.msra.mxu0 0
        %1780 = vmatpush.bf16.xpose.msra.mxu0 0
        %1781 = vmatpush.bf16.xpose.msra.mxu0 0
        %1782 = vmatpush.bf16.xpose.msra.mxu0 0
        %1783 = vmatpush.bf16.xpose.msra.mxu0 0
        %1784 = vmatpush.bf16.xpose.msra.mxu0 0
        %1785 = vmatpush.bf16.xpose.msra.mxu0 %v1776
        %1786 = vmatmul.bf16.gmra.mxu0 %v1773
        %v1787 = vpop.f32.mrf.mxu0
        %v1788 = vadd.f32 0.0, %v1787
        %v1789 = vpop.f32.mrf.mxu0
        %1790 = vdwg.mxu0
        %v1792 = vsel %vm858, %v1521, 0
        %v1795 = vsel %vm858, %v1643, 0
        %1797 = vmatpush.bf16.xpose.msra.mxu0 0
        %1798 = vmatpush.bf16.xpose.msra.mxu0 0
        %1799 = vmatpush.bf16.xpose.msra.mxu0 0
        %1800 = vmatpush.bf16.xpose.msra.mxu0 0
        %1801 = vmatpush.bf16.xpose.msra.mxu0 0
        %1802 = vmatpush.bf16.xpose.msra.mxu0 0
        %1803 = vmatpush.bf16.xpose.msra.mxu0 0
        %1804 = vmatpush.bf16.xpose.msra.mxu0 %v1795
        %1805 = vmatmul.bf16.gmra.mxu0 %v1792
        %v1806 = vpop.f32.mrf.mxu0
        %v1807 = vadd.f32 0.0, %v1806
        %v1808 = vpop.f32.mrf.mxu0
        %1809 = vdwg.mxu0
        %v1811 = vsel %vm858, %v1524, 0
        %v1814 = vsel %vm858, %v1646, 0
        %1816 = vmatpush.bf16.xpose.msra.mxu0 0
        %1817 = vmatpush.bf16.xpose.msra.mxu0 0
        %1818 = vmatpush.bf16.xpose.msra.mxu0 0
        %1819 = vmatpush.bf16.xpose.msra.mxu0 0
        %1820 = vmatpush.bf16.xpose.msra.mxu0 0
        %1821 = vmatpush.bf16.xpose.msra.mxu0 0
        %1822 = vmatpush.bf16.xpose.msra.mxu0 0
        %1823 = vmatpush.bf16.xpose.msra.mxu0 %v1814
        %1824 = vmatmul.bf16.gmra.mxu0 %v1811
        %v1825 = vpop.f32.mrf.mxu0
        %v1826 = vadd.f32 0.0, %v1825
        %v1827 = vpop.f32.mrf.mxu0
        %1828 = vdwg.mxu0
        %v1830 = vsel %vm858, %v1527, 0
        %v1833 = vsel %vm858, %v1649, 0
        %1835 = vmatpush.bf16.xpose.msra.mxu0 0
        %1836 = vmatpush.bf16.xpose.msra.mxu0 0
        %1837 = vmatpush.bf16.xpose.msra.mxu0 0
        %1838 = vmatpush.bf16.xpose.msra.mxu0 0
        %1839 = vmatpush.bf16.xpose.msra.mxu0 0
        %1840 = vmatpush.bf16.xpose.msra.mxu0 0
        %1841 = vmatpush.bf16.xpose.msra.mxu0 0
        %1842 = vmatpush.bf16.xpose.msra.mxu0 %v1833
        %1843 = vmatmul.bf16.gmra.mxu0 %v1830
        %v1844 = vpop.f32.mrf.mxu0
        %v1845 = vadd.f32 0.0, %v1844
        %v1846 = vpop.f32.mrf.mxu0
        %1847 = vdwg.mxu0
        %v1848 = vsub.f32 %v1788, %v936
        %v1849 = vsub.f32 %v1807, %v936
        %v1850 = vsub.f32 %v1826, %v936
        %v1851 = vsub.f32 %v1845, %v936
        %v1852 = vsel %vm858, %v1848, -inf
        %1853 = vmax.xlane.f32.xlu0 %v1852
        %v1854 = vpop.xlane.xlu0 %1853
        %v1855 = vsel %vm858, %v1849, -inf
        %1856 = vmax.xlane.f32.xlu0 %v1855
        %v1857 = vpop.xlane.xlu0 %1856
        %v1858 = vsel %vm858, %v1850, -inf
        %1859 = vmax.xlane.f32.xlu0 %v1858
        %v1860 = vpop.xlane.xlu0 %1859
        %v1861 = vsel %vm858, %v1851, -inf
        %1862 = vmax.xlane.f32.xlu0 %v1861
        %v1863 = vpop.xlane.xlu0 %1862
        %v1864 = vsub.f32 %v1848, %v1854
        %v1865 = vsub.f32 %v1849, %v1857
        %v1866 = vsub.f32 %v1850, %v1860
        %v1867 = vsub.f32 %v1851, %v1863
        %v1868 = vmul.f32 %v1864, 1.442695
        %v1869 = vpow.pop %v1868
        %v1870 = vmul.f32 %v1865, 1.442695
        %v1871 = vpow.pop %v1870
        %v1872 = vmul.f32 %v1866, 1.442695
        %v1873 = vpow.pop %v1872
        %v1874 = vmul.f32 %v1867, 1.442695
        %v1875 = vpow.pop %v1874
        %v1876 = vsel %vm858, %v1869, 0.0
        %1877 = vadd.xlane.f32.xlu0 %v1876
        %v1878 = vpop.xlane.xlu0 %1877
        %v1879 = vsel %vm858, %v1871, 0.0
        %1880 = vadd.xlane.f32.xlu0 %v1879
        %v1881 = vpop.xlane.xlu0 %1880
        %v1882 = vsel %vm858, %v1873, 0.0
        %1883 = vadd.xlane.f32.xlu0 %v1882
        %v1884 = vpop.xlane.xlu0 %1883
        %v1885 = vsel %vm858, %v1875, 0.0
        %1886 = vadd.xlane.f32.xlu0 %v1885
        %v1887 = vpop.xlane.xlu0 %1886
        %v1888 = vrcp.pop %v1878
        %v1889 = vrcp.pop %v1881
        %v1890 = vrcp.pop %v1884
        %v1891 = vrcp.pop %v1887
        %v1892 = vmul.f32 %v1869, %v1888
        %v1893 = vmul.f32 %v1871, %v1889
        %v1894 = vmul.f32 %v1873, %v1890
        %v1895 = vmul.f32 %v1875, %v1891
        %v1896 = vpack.c.bf16 %v1892, %v1892
        %v1897 = vpack.c.bf16 %v1893, %v1893
        %v1898 = vpack.c.bf16 %v1894, %v1894
        %v1899 = vpack.c.bf16 %v1895, %v1895
        %v1901 = vsel %vm858, %v1896, 0
        %v1904 = vsel %vm993, %v1762, 0
        %1906 = vmatpush.bf16.msra.mxu0 0
        %1907 = vmatpush.bf16.msra.mxu0 0
        %1908 = vmatpush.bf16.msra.mxu0 0
        %1909 = vmatpush.bf16.msra.mxu0 0
        %1910 = vmatpush.bf16.msra.mxu0 0
        %1911 = vmatpush.bf16.msra.mxu0 0
        %1912 = vmatpush.bf16.msra.mxu0 0
        %1913 = vmatpush.bf16.msra.mxu0 %v1904
        %1914 = vmatmul.bf16.gmra.mxu0 %v1901
        %v1915 = vpop.f32.mrf.mxu0
        %v1916 = vadd.f32 0.0, %v1915
        %v1917 = vpop.f32.mrf.mxu0
        %1918 = vdwg.mxu0
        %v1920 = vsel %vm858, %v1897, 0
        %v1923 = vsel %vm993, %v1765, 0
        %1925 = vmatpush.bf16.msra.mxu0 0
        %1926 = vmatpush.bf16.msra.mxu0 0
        %1927 = vmatpush.bf16.msra.mxu0 0
        %1928 = vmatpush.bf16.msra.mxu0 0
        %1929 = vmatpush.bf16.msra.mxu0 0
        %1930 = vmatpush.bf16.msra.mxu0 0
        %1931 = vmatpush.bf16.msra.mxu0 0
        %1932 = vmatpush.bf16.msra.mxu0 %v1923
        %1933 = vmatmul.bf16.gmra.mxu0 %v1920
        %v1934 = vpop.f32.mrf.mxu0
        %v1935 = vadd.f32 0.0, %v1934
        %v1936 = vpop.f32.mrf.mxu0
        %1937 = vdwg.mxu0
        %v1939 = vsel %vm858, %v1898, 0
        %v1942 = vsel %vm993, %v1768, 0
        %1944 = vmatpush.bf16.msra.mxu0 0
        %1945 = vmatpush.bf16.msra.mxu0 0
        %1946 = vmatpush.bf16.msra.mxu0 0
        %1947 = vmatpush.bf16.msra.mxu0 0
        %1948 = vmatpush.bf16.msra.mxu0 0
        %1949 = vmatpush.bf16.msra.mxu0 0
        %1950 = vmatpush.bf16.msra.mxu0 0
        %1951 = vmatpush.bf16.msra.mxu0 %v1942
        %1952 = vmatmul.bf16.gmra.mxu0 %v1939
        %v1953 = vpop.f32.mrf.mxu0
        %v1954 = vadd.f32 0.0, %v1953
        %v1955 = vpop.f32.mrf.mxu0
        %1956 = vdwg.mxu0
        %v1958 = vsel %vm858, %v1899, 0
        %v1961 = vsel %vm993, %v1771, 0
        %1963 = vmatpush.bf16.msra.mxu0 0
        %1964 = vmatpush.bf16.msra.mxu0 0
        %1965 = vmatpush.bf16.msra.mxu0 0
        %1966 = vmatpush.bf16.msra.mxu0 0
        %1967 = vmatpush.bf16.msra.mxu0 0
        %1968 = vmatpush.bf16.msra.mxu0 0
        %1969 = vmatpush.bf16.msra.mxu0 0
        %1970 = vmatpush.bf16.msra.mxu0 %v1961
        %1971 = vmatmul.bf16.gmra.mxu0 %v1958
        %v1972 = vpop.f32.mrf.mxu0
        %v1973 = vadd.f32 0.0, %v1972
        %v1974 = vpop.f32.mrf.mxu0
        %1975 = vdwg.mxu0
        %v1976 = vrot.slane %v1954, 4
        %v1977 = vsel %vm1068, %v1976, %v1916
        %v1978 = vrot.slane %v1916, 4
        %v1979 = vsel %vm1068, %v1954, %v1978
        %v1981 = vunpack.c.l.s4 1983009808
        %v1982 = vunpack.c.0.s8 %v1981
        %v1983 = vperm.slane %v1977, %v1982
        %v1985 = vunpack.c.l.s4 1983009808
        %v1986 = vunpack.c.0.s8 %v1985
        %v1987 = vperm.slane %v1979, %v1986
        %v1988 = vrot.slane %v1973, 4
        %v1989 = vsel %vm1068, %v1988, %v1935
        %v1990 = vrot.slane %v1935, 4
        %v1991 = vsel %vm1068, %v1973, %v1990
        %v1993 = vunpack.c.l.s4 1983009808
        %v1994 = vunpack.c.0.s8 %v1993
        %v1995 = vperm.slane %v1989, %v1994
        %v1997 = vunpack.c.l.s4 1983009808
        %v1998 = vunpack.c.0.s8 %v1997
        %v1999 = vperm.slane %v1991, %v1998
        %v2000 = vrot.slane %v1995, 4
        %v2001 = vsel %vm1068, %v2000, %v1983
        %v2002 = vrot.slane %v1983, 4
        %v2003 = vsel %vm1068, %v1995, %v2002
        %v2005 = vunpack.c.l.s4 1934713408
        %v2006 = vunpack.c.0.s8 %v2005
        %v2007 = vperm.slane %v2001, %v2006
        %v2009 = vunpack.c.l.s4 1934713408
        %v2010 = vunpack.c.0.s8 %v2009
        %v2011 = vperm.slane %v2003, %v2010
        %v2012 = vrot.slane %v1999, 4
        %v2013 = vsel %vm1068, %v2012, %v1987
        %v2014 = vrot.slane %v1987, 4
        %v2015 = vsel %vm1068, %v1999, %v2014
        %v2017 = vunpack.c.l.s4 1934713408
        %v2018 = vunpack.c.0.s8 %v2017
        %v2019 = vperm.slane %v2013, %v2018
        %v2021 = vunpack.c.l.s4 1934713408
        %v2022 = vunpack.c.0.s8 %v2021
        %v2023 = vperm.slane %v2015, %v2022
        %v2024 = vrot.slane %v2007, 4
        %v2025 = vsel %vm1068, 0.0, %v2024
        %v2026 = vrot.slane %v2011, 4
        %v2027 = vsel %vm1068, 0.0, %v2026
        %v2028 = vrot.slane %v2019, 4
        %v2029 = vsel %vm1068, 0.0, %v2028
        %v2030 = vrot.slane %v2023, 4
        %v2031 = vsel %vm1068, 0.0, %v2030
        %v2032 = vsel %vm1068, %v2026, %v2007
        %v2034 = vunpack.c.l.s4 1983009808
        %v2035 = vunpack.c.0.s8 %v2034
        %v2036 = vperm.slane %v2032, %v2035
        %v2037 = vrot.slane %v2027, 4
        %v2038 = vsel %vm1068, %v2037, %v2025
        %v2040 = vunpack.c.l.s4 1983009808
        %v2041 = vunpack.c.0.s8 %v2040
        %v2042 = vperm.slane %v2038, %v2041
        %v2043 = vsel %vm1068, %v2030, %v2019
        %v2045 = vunpack.c.l.s4 1983009808
        %v2046 = vunpack.c.0.s8 %v2045
        %v2047 = vperm.slane %v2043, %v2046
        %v2048 = vrot.slane %v2031, 4
        %v2049 = vsel %vm1068, %v2048, %v2029
        %v2051 = vunpack.c.l.s4 1983009808
        %v2052 = vunpack.c.0.s8 %v2051
        %v2053 = vperm.slane %v2049, %v2052
        %v2054 = vrot.slane %v2042, 4
        %v2055 = vsel %vm1068, %v2054, %v2036
        %v2056 = vrot.slane %v2036, 4
        %v2057 = vsel %vm1068, %v2042, %v2056
        %v2059 = vunpack.c.l.s4 1934713408
        %v2060 = vunpack.c.0.s8 %v2059
        %v2061 = vperm.slane %v2055, %v2060
        %v2063 = vunpack.c.l.s4 1934713408
        %v2064 = vunpack.c.0.s8 %v2063
        %v2065 = vperm.slane %v2057, %v2064
        %v2066 = vrot.slane %v2053, 4
        %v2067 = vsel %vm1068, %v2066, %v2047
        %v2068 = vrot.slane %v2047, 4
        %v2069 = vsel %vm1068, %v2053, %v2068
        %v2071 = vunpack.c.l.s4 1934713408
        %v2072 = vunpack.c.0.s8 %v2071
        %v2073 = vperm.slane %v2067, %v2072
        %v2075 = vunpack.c.l.s4 1934713408
        %v2076 = vunpack.c.0.s8 %v2075
        %v2077 = vperm.slane %v2069, %v2076
        %v2078 = vrot.slane %v2073, 4
        %v2079 = vsel %vm1068, %v2078, %v2061
        %v2080 = vrot.slane %v2061, 4
        %v2081 = vsel %vm1068, %v2073, %v2080
        %v2082 = vrot.slane %v2077, 4
        %v2083 = vsel %vm1068, %v2082, %v2065
        %v2084 = vrot.slane %v2065, 4
        %v2085 = vsel %vm1068, %v2077, %v2084
        %2087 = vrot.lane.b32.xlu0 %v2081, 8
        %v2088 = vpop.permute.xlu0 %2087
        %2091 = vrot.lane.b32.xlu0 %v2083, 16
        %v2092 = vpop.permute.xlu0 %2091
        %2095 = vrot.lane.b32.xlu0 %v2085, 24
        %v2096 = vpop.permute.xlu0 %2095
        %v2098 = vsel %vm858, %v2079, %v2088
        %v2099 = vsel %vm1191, %v2098, %v2092
        %v2100 = vsel %vm1193, %v2099, %v2096
        %v2101 = vpack.c.bf16 %v2100, %v2100
        %v2103 = vsel %vm428, %v2101, 0
        %2105 = vmatpush.bf16.msra.mxu0 0
        %2106 = vmatpush.bf16.msra.mxu0 0
        %2107 = vmatpush.bf16.msra.mxu0 0
        %2108 = vmatpush.bf16.msra.mxu0 0
        %2109 = vmatpush.bf16.msra.mxu0 0
        %2110 = vmatpush.bf16.msra.mxu0 0
        %2111 = vmatpush.bf16.msra.mxu0 %v1205
        %2112 = vmatpush.bf16.msra.mxu0 %v1204
        %2113 = vmatmul.bf16.gmra.mxu0 %v2103
        %v2114 = vpop.f32.mrf.mxu0
        %v2115 = vadd.f32 %v396, %v2114
        %v2116 = vpop.f32.mrf.mxu0
        %2117 = vdwg.mxu0
        %v2118 = vadd.f32 %v2100, %v2115
        %v2119 = vsel %vm428, %v2118, 0.0
        %2120 = vadd.xlane.f32.xlu0 %v2119
        %v2121 = vpop.xlane.xlu0 %2120
        %v2122 = vmul.f32 %v2121, %v438
        %v2123 = vsub.f32 %v2118, %v2122
        %v2124 = vmul.f32 %v2123, %v2123
        %v2125 = vsel %vm428, %v2124, 0.0
        %2126 = vadd.xlane.f32.xlu0 %v2125
        %v2127 = vpop.xlane.xlu0 %2126
        %v2128 = vmul.f32 %v2127, %v438
        %v2129 = vadd.f32 %v2128, 1e-05
        %v2130 = vrsqrt.pop %v2129
        %v2131 = vmul.f32 %v2130, %v2129
        %v2132 = vmul.f32 %v2131, %v2130
        %v2133 = vmul.f32 0.5, %v2132
        %v2134 = vsub.f32 1.5, %v2133
        %v2135 = vmul.f32 %v2130, %v2134
        %vm2136 = vweird.f32 %v2129
        %vm2137 = vweird.f32 %v2130
        %vm2138 = vmor %vm2136, %vm2137
        %v2139 = vsel %vm2138, %v2130, %v2135
        %v2140 = vmul.f32 %v2123, %v2139
        %v2141 = vmul.f32 %v2140, %v1247
        %v2142 = vadd.f32 %v2141, %v1249
        %v2143 = vpack.c.bf16 %v2142, %v2142
        %v2145 = vsel %vm428, %v2143, 0
        %2147 = vmatpush.bf16.msra.mxu0 0
        %2148 = vmatpush.bf16.msra.mxu0 0
        %2149 = vmatpush.bf16.msra.mxu0 0
        %2150 = vmatpush.bf16.msra.mxu0 0
        %2151 = vmatpush.bf16.msra.mxu0 0
        %2152 = vmatpush.bf16.msra.mxu0 0
        %2153 = vmatpush.bf16.msra.mxu0 %v1261
        %2154 = vmatpush.bf16.msra.mxu0 %v1260
        %2155 = vmatmul.bf16.gmra.mxu0 %v2145
        %v2156 = vpop.f32.mrf.mxu0
        %v2157 = vadd.f32 %v400, %v2156
        %v2158 = vpop.f32.mrf.mxu0
        %2159 = vdwg.mxu0
        %v2160 = vmul.f32 %v2157, 0.5
        %v2161 = vmul.f32 %v2157, 0.70710677
        %v2162 = vand.u32 2147483647, %v2161
        %v2163 = vmul.f32 %v2162, 0.3275911
        %v2164 = vadd.f32 %v2163, 1.0
        %v2165 = vrcp.pop %v2164
        %v2166 = vmul.f32 %v2164, %v2165
        %v2167 = vsub.f32 1.0, %v2166
        %v2168 = vmul.f32 %v2165, %v2167
        %v2169 = vadd.f32 %v2165, %v2168
        %vm2170 = vweird.f32 %v2164
        %vm2171 = vweird.f32 %v2165
        %vm2172 = vmor %vm2170, %vm2171
        %v2173 = vsel %vm2172, %v2165, %v2169
        %v2174 = vand.u32 2147483647, %v2164
        %vm2175 = vcmp.eq.f32.partialorder %v2174, 8.507059e+37
        %v2176 = vand.u32 %v2164, 2147483648
        %v2177 = vor.u32 1.1754944e-38, %v2176
        %v2178 = vsel %vm2175, %v2177, %v2173
        %v2179 = vmul.f32 1.0, %v2178
        %v2180 = vmul.f32 %v2179, 1.0614054
        %v2181 = vadd.f32 %v2180, -1.4531521
        %v2182 = vmul.f32 %v2181, %v2179
        %v2183 = vadd.f32 %v2182, 1.4214138
        %v2184 = vmul.f32 %v2183, %v2179
        %v2185 = vadd.f32 %v2184, -0.28449672
        %v2186 = vmul.f32 %v2185, %v2179
        %v2187 = vadd.f32 %v2186, 0.2548296
        %v2188 = vmul.f32 %v2187, %v2179
        %v2189 = vsub.f32 0.0, %v2162
        %v2190 = vmul.f32 %v2189, %v2162
        %v2191 = vmul.f32 %v2190, 1.442695
        %v2192 = vpow.pop %v2191
        %v2193 = vmul.f32 %v2188, %v2192
        %v2194 = vsub.f32 1.0, %v2193
        %vm2195 = vcmp.ge.f32.partialorder %v2161, 0.0
        %v2196 = vsub.f32 0.0, %v2194
        %v2197 = vsel %vm2195, %v2194, %v2196
        %v2198 = vadd.f32 %v2197, 1.0
        %v2199 = vmul.f32 %v2160, %v2198
        %v2200 = vpack.c.bf16 %v2199, %v2199
        %v2202 = vsel %vm1345, %v2200, 0
        %2204 = vmatpush.bf16.msra.mxu0 0
        %2205 = vmatpush.bf16.msra.mxu0 0
        %2206 = vmatpush.bf16.msra.mxu0 0
        %2207 = vmatpush.bf16.msra.mxu0 0
        %2208 = vmatpush.bf16.msra.mxu0 %v1340
        %2209 = vmatpush.bf16.msra.mxu0 %v1339
        %2210 = vmatpush.bf16.msra.mxu0 %v1338
        %2211 = vmatpush.bf16.msra.mxu0 %v1337
        %2212 = vmatmul.bf16.gmra.mxu0 %v2202
        %v2213 = vpop.f32.mrf.mxu0
        %v2214 = vadd.f32 %v397, %v2213
        %v2215 = vpop.f32.mrf.mxu0
        %2216 = vdwg.mxu0
        %v2217 = vadd.f32 %v2142, %v2214
        %v2218 = vsel %vm428, %v2217, 0.0
        %2219 = vadd.xlane.f32.xlu0 %v2218
        %v2220 = vpop.xlane.xlu0 %2219
        %v2221 = vmul.f32 %v2220, %v438
        %v2222 = vsub.f32 %v2217, %v2221
        %v2223 = vmul.f32 %v2222, %v2222
        %v2224 = vsel %vm428, %v2223, 0.0
        %2225 = vadd.xlane.f32.xlu0 %v2224
        %v2226 = vpop.xlane.xlu0 %2225
        %v2227 = vmul.f32 %v2226, %v438
        %v2228 = vadd.f32 %v2227, 1e-05
        %v2229 = vrsqrt.pop %v2228
        %v2230 = vmul.f32 %v2229, %v2228
        %v2231 = vmul.f32 %v2230, %v2229
        %v2232 = vmul.f32 0.5, %v2231
        %v2233 = vsub.f32 1.5, %v2232
        %v2234 = vmul.f32 %v2229, %v2233
        %vm2235 = vweird.f32 %v2228
        %vm2236 = vweird.f32 %v2229
        %vm2237 = vmor %vm2235, %vm2236
        %v2238 = vsel %vm2237, %v2229, %v2234
        %v2239 = vmul.f32 %v2222, %v2238
        %v2240 = vmul.f32 %v2239, %v1385
        %v2241 = vadd.f32 %v2240, %v1387
        %2242 = vst.msk [vmem:[%s389] sm:$0xff] %vm428, %v2241
        %s2243 = sand.u32 %s234, 1
        %s2244 = scalar_lea.sflag [#allocation4], %s2243
        %s2245 = sand.u32 %s234, 1
        %s2246 = smul.addr %s2245, 8
        %s2247 = scalar_lea.vmem [#allocation8], %s2246
        // Predicated region
        $region69: #{tpu_custom_call.1} parent=55 // pred_check
          %p2248 = pneg %p244
        $region70: #{tpu_custom_call.1} parent=55 // pred_check_branch
          %2250 = sbr.rel (%p2248) target = $region72
        $region71: #{tpu_custom_call.1} parent=55 // pred_region
          %2252 = vsyncadd %s2244, 0
          %s2253 = smul.addr %s27, 8
          %s2254 = scalar_lea.hbm %s9, %s2253
          %s2256 = sshll.u32 %s2247, 4
          %s2257 = int_to_ptr.vmem [resolvable:$true] %s2256
          %s2258 = sshll.u32 %s2254, 4
          %s2259 = int_to_ptr.hbm [resolvable:$true] %s2258
          %2261 = dma.vmem_to_hbm [thread:$0]  %s2257, 128, %s2259, %s2244
        $region72: #{tpu_custom_call.1} parent=55 // pred_fallthru
          _
      $region56: #{tpu_custom_call.1} parent=5 // pred_fallthru
        _
      %p2262 = scmp.le.s32.totalorder 2, %s22
      // Predicated region
      $region73: #{tpu_custom_call.1} parent=5 // pred_check
        %p2263 = pneg %p2262
      $region74: #{tpu_custom_call.1} parent=5 // pred_check_branch
        %2265 = sbr.rel (%p2263) target = $region76
      $region75: #{tpu_custom_call.1} parent=5 // pred_region
        %s2266 = ssub.s32 %s22, 2
        // Predicated region
        $region77: #{tpu_custom_call.1} parent=75 // pred_check
          %p2267 = pneg %p250
        $region78: #{tpu_custom_call.1} parent=75 // pred_check_branch
          %2269 = sbr.rel (%p2267) target = $region80
        $region79: #{tpu_custom_call.1} parent=75 // pred_region
          %s2270 = sand.u32 %s235, 1
          %s2271 = scalar_lea.sflag [#allocation4], %s2270
          %s2272 = sand.u32 %s235, 1
          %s2273 = smul.addr %s2272, 8
          %s2274 = scalar_lea.vmem [#allocation8], %s2273
          %2276 = dma.done %s2271, 128
        $region80: #{tpu_custom_call.1} parent=75 // pred_fallthru
          _
      $region76: #{tpu_custom_call.1} parent=5 // pred_fallthru
        _
    $region6: #{tpu_custom_call.1} parent=1 // loop_footer
      %s26 = sadd.s32 1, %s22
    $region7: #{tpu_custom_call.1} parent=1 // loop_footer_branch
      %21 = sbr.rel target = $region3
    $region8: #{tpu_custom_call.1} parent=1 // loop_exit
      _
    %2277 = vsyncpa [#allocation3], 1
    %s2278 = scalar_lea.sflag [#allocation3], 1
    %2279 = vsyncpa %s2278, 1
    %2280 = vsyncpa [#allocation6], 1
    %2281 = vsyncpa [#allocation4], 1
    %s2282 = scalar_lea.sflag [#allocation4], 1
    %2283 = vsyncpa %s2282, 1

</llo_original>
